<compile_context>
chip_gen: v7x
topology: tpu7x:2x2x1
jax: 0.10.0
libtpu: 0.0.40
codegen_flags: <defaults>
</compile_context>

<pallas_src>
import jax
import jax.numpy as jnp
from jax.experimental import pallas as pl
from jax.experimental.pallas import tpu as pltpu


# ----------------------------- model constants -----------------------------
N_EMBD = 32          # n_embd
N_HEAD = 4           # n_head
HEAD_SIZE = N_EMBD // N_HEAD
BLOCK_SIZE = 8       # GptConstants.block_size (== T in the test)
LN_EPS = 1e-5


def _layer_norm(x, gamma, beta):
    # PyTorch nn.LayerNorm over the last dim, biased variance, eps=1e-5.
    mean = jnp.mean(x, axis=-1, keepdims=True)
    var = jnp.mean((x - mean) ** 2, axis=-1, keepdims=True)
    return (x - mean) * jax.lax.rsqrt(var + LN_EPS) * gamma + beta


# ----------------------------- fused kernel -----------------------------
def block_kernel(x_ref,
                 wqkv_ref,
                 wproj_ref, bproj_ref,
                 g1_ref, b1_ref,
                 w1_ref, bf1_ref,
                 w2_ref, bf2_ref,
                 g2_ref, b2_ref,
                 out_ref):
    bb, T, C = x_ref.shape

    x3 = x_ref[...]                          # (bb, T, C) — one load for the whole block
    x2 = x3.reshape(bb * T, C)               # layout-preserving (T == 8 sublanes)

    # ----- fused QKV projection: one (C, 3C) matmul over all rows in the block -----
    qkv = jnp.dot(x2, wqkv_ref[...], preferred_element_type=jnp.float32)   # (bb*T, 3C)
    q = qkv[:, 0 * C:1 * C].reshape(bb, T, C)
    k = qkv[:, 1 * C:2 * C].reshape(bb, T, C)
    v = qkv[:, 2 * C:3 * C].reshape(bb, T, C)

    # Causal mask: built once per invocation, depends only on T.
    row = jax.lax.broadcasted_iota(jnp.int32, (T, T), 0)
    col = jax.lax.broadcasted_iota(jnp.int32, (T, T), 1)
    causal = row >= col                                                      # tril

    scale = HEAD_SIZE ** -0.5
    head_outs = []
    for h in range(N_HEAD):                 # unrolled; each head batched over bb rows
        lo = h * HEAD_SIZE
        qh = q[:, :, lo:lo + HEAD_SIZE]                                      # (bb, T, hs)
        kh = k[:, :, lo:lo + HEAD_SIZE]
        vh = v[:, :, lo:lo + HEAD_SIZE]
        s = jnp.einsum('btd,bsd->bts', qh, kh,
                       preferred_element_type=jnp.float32) * scale           # (bb, T, T)
        s = jnp.where(causal, s, -jnp.inf)
        s = s - jnp.max(s, axis=-1, keepdims=True)
        e = jnp.exp(s)
        denom = jnp.sum(e, axis=-1, keepdims=True)
        # one reciprocal per row, then a broadcast multiply (no (T,T) divide)
        p = e * pl.reciprocal(denom, approx=False)
        head_outs.append(jnp.einsum('bts,bsd->btd', p, vh,
                                    preferred_element_type=jnp.float32))     # (bb, T, hs)

    sa = jnp.concatenate(head_outs, axis=-1).reshape(bb * T, C)              # (bb*T, C)
    sa = jnp.dot(sa, wproj_ref[...], preferred_element_type=jnp.float32) + bproj_ref[...]

    # ----- residual + ln1 -----
    x1 = _layer_norm(x2 + sa, g1_ref[...], b1_ref[...])                      # (bb*T, C)

    # ----- feed-forward -----
    h1 = jnp.dot(x1, w1_ref[...], preferred_element_type=jnp.float32) + bf1_ref[...]
    h1 = jnp.maximum(h1, 0.0)                                                # ReLU
    ff = jnp.dot(h1, w2_ref[...], preferred_element_type=jnp.float32) + bf2_ref[...]

    # ----- residual + ln2, single lane-dense store for the whole block -----
    out = _layer_norm(x1 + ff, g2_ref[...], b2_ref[...])
    out_ref[...] = out.reshape(bb, T, C)


def _choose_block_b(B, T):
    """Pick batch elements per grid step: fold batch for MXU fill, but keep >= 2
    grid steps when B >= 2 so both v7x TensorCores get work."""
    target_rows = 512                       # bb*T rows per step; tiny vs VMEM even on v7x
    max_bb = max(1, target_rows // max(T, 1))
    if B >= 2:
        max_bb = max(1, min(max_bb, B // 2))
    bb = 1
    for d in range(1, min(B, max_bb) + 1):  # largest divisor of B that fits
        if B % d == 0:
            bb = d
    return bb


def gpt_block(x, params, block_b=None):
    (wq, wk, wv, wproj, bproj, g1, b1, w1, bf1, w2, bf2, g2, b2) = params
    B, T, C = x.shape

    # Fuse Q/K/V weights into a single (C, 3C) matrix (done once, outside the kernel).
    wqkv = jnp.concatenate([wq, wk, wv], axis=1)

    if block_b is None:
        block_b = _choose_block_b(B, T)
    assert B % block_b == 0, "batch must be divisible by the chosen block size"
    grid_b = B // block_b

    # Weights/biases use constant index_maps -> resident in VMEM (no re-DMA per step).
    full = lambda shape: pl.BlockSpec(shape, lambda b, _s=shape: (0,) * len(_s))
    in_specs = [
        pl.BlockSpec((block_b, T, C), lambda b: (b, 0, 0)),   # x: block of batch elements
        full((C, 3 * C)),                                     # fused Wqkv
        full((C, C)),                                         # Wproj
        full((1, C)),                                         # bproj
        full((1, C)), full((1, C)),                           # ln1 gamma, beta
        full((C, 4 * C)), full((1, 4 * C)),                   # ffwd W1, b1
        full((4 * C, C)), full((1, C)),                       # ffwd W2, b2
        full((1, C)), full((1, C)),                           # ln2 gamma, beta
    ]
    return pl.pallas_call(
        block_kernel,
        out_shape=jax.ShapeDtypeStruct((B, T, C), jnp.float32),
        grid_spec=pltpu.PrefetchScalarGridSpec(
            num_scalar_prefetch=0,
            grid=(grid_b,),
            in_specs=in_specs,
            out_specs=pl.BlockSpec((block_b, T, C), lambda b: (b, 0, 0)),
        ),
        compiler_params=pltpu.CompilerParams(
            dimension_semantics=("parallel",),   # batch blocks split across TCs (v7x)
        ),
    )(x, wqkv, wproj, bproj, g1, b1, w1, bf1, w2, bf2, g2, b2)


# ----------------------------- pure-JAX reference -----------------------------
def gpt_block_ref(x, params):
    (wq, wk, wv, wproj, bproj, g1, b1, w1, bf1, w2, bf2, g2, b2) = params
    B, T, C = x.shape
    q = x @ wq
    k = x @ wk
    v = x @ wv
    q = q.reshape(B, T, N_HEAD, HEAD_SIZE).transpose(0, 2, 1, 3)
    k = k.reshape(B, T, N_HEAD, HEAD_SIZE).transpose(0, 2, 1, 3)
    v = v.reshape(B, T, N_HEAD, HEAD_SIZE).transpose(0, 2, 1, 3)
    s = jnp.einsum("bhqd,bhkd->bhqk", q, k) * HEAD_SIZE ** -0.5
    mask = jnp.tril(jnp.ones((T, T), dtype=bool))
    s = jnp.where(mask, s, -jnp.inf)
    p = jax.nn.softmax(s, axis=-1)
    sa = jnp.einsum("bhqk,bhkd->bhqd", p, v).transpose(0, 2, 1, 3).reshape(B, T, C)
    sa = sa @ wproj + bproj[0]
    x1 = _layer_norm(x + sa, g1[0], b1[0])
    ff = jnp.maximum(x1 @ w1 + bf1[0], 0.0) @ w2 + bf2[0]
    return _layer_norm(x1 + ff, g2[0], b2[0])


# ----------------------------- parameter construction -----------------------------
def make_params(key):
    ks = jax.random.split(key, 8)
    C = N_EMBD
    scale = 0.02
    wq = scale * jax.random.normal(ks[0], (C, C), jnp.float32)
    wk = scale * jax.random.normal(ks[1], (C, C), jnp.float32)
    wv = scale * jax.random.normal(ks[2], (C, C), jnp.float32)
    wproj = scale * jax.random.normal(ks[3], (C, C), jnp.float32)
    bproj = jnp.zeros((1, C), jnp.float32)
    g1 = jnp.ones((1, C), jnp.float32)
    b1 = jnp.zeros((1, C), jnp.float32)
    w1 = scale * jax.random.normal(ks[4], (C, 4 * C), jnp.float32)
    bf1 = 0.01 * jax.random.normal(ks[5], (1, 4 * C), jnp.float32)
    w2 = scale * jax.random.normal(ks[6], (4 * C, C), jnp.float32)
    bf2 = 0.01 * jax.random.normal(ks[7], (1, C), jnp.float32)
    g2 = jnp.ones((1, C), jnp.float32)
    b2 = jnp.zeros((1, C), jnp.float32)
    return (wq, wk, wv, wproj, bproj, g1, b1, w1, bf1, w2, bf2, g2, b2)


if __name__ == "__main__":
    key = jax.random.PRNGKey(0)
    kx, kp = jax.random.split(key)
    B, T, C = 2, BLOCK_SIZE, N_EMBD
    x = jax.random.normal(kx, (B, T, C), jnp.float32)
    params = make_params(kp)

    out = gpt_block(x, params)
    out = jax.block_until_ready(out)

    ref = gpt_block_ref(x, params)
    assert out.shape == (B, T, C)
    assert jnp.allclose(out, ref, atol=1e-4, rtol=1e-4), "mismatch vs JAX reference"
    print("KERNEL_OK")
</pallas_src>

<mosaic_0001>
module attributes {stable_mosaic.version = 11 : i64} {
  func.func @block_kernel(%arg0: i32, %arg1: memref<1x8x32xf32, #tpu.memory_space<vmem>>, %arg2: memref<32x96xf32, #tpu.memory_space<vmem>>, %arg3: memref<32x32xf32, #tpu.memory_space<vmem>>, %arg4: memref<1x32xf32, #tpu.memory_space<vmem>>, %arg5: memref<1x32xf32, #tpu.memory_space<vmem>>, %arg6: memref<1x32xf32, #tpu.memory_space<vmem>>, %arg7: memref<32x128xf32, #tpu.memory_space<vmem>>, %arg8: memref<1x128xf32, #tpu.memory_space<vmem>>, %arg9: memref<128x32xf32, #tpu.memory_space<vmem>>, %arg10: memref<1x32xf32, #tpu.memory_space<vmem>>, %arg11: memref<1x32xf32, #tpu.memory_space<vmem>>, %arg12: memref<1x32xf32, #tpu.memory_space<vmem>>, %arg13: memref<1x8x32xf32, #tpu.memory_space<vmem>>) attributes {dimension_semantics = [#tpu.dimension_semantics<parallel>], iteration_bounds = array<i64: 2>, scalar_prefetch = 0 : i64, scratch_operands = 0 : i64, tpu.core_type = #tpu.core_type<tc>, window_params = [{transform_indices = @transform_0, window_bounds = array<i64: 1, 8, 32>}, {pipeline_mode = #tpu.pipeline_mode<synchronous>, transform_indices = @transform_1, window_bounds = array<i64: 32, 96>}, {pipeline_mode = #tpu.pipeline_mode<synchronous>, transform_indices = @transform_2, window_bounds = array<i64: 32, 32>}, {pipeline_mode = #tpu.pipeline_mode<synchronous>, transform_indices = @transform_3, window_bounds = array<i64: 1, 32>}, {pipeline_mode = #tpu.pipeline_mode<synchronous>, transform_indices = @transform_4, window_bounds = array<i64: 1, 32>}, {pipeline_mode = #tpu.pipeline_mode<synchronous>, transform_indices = @transform_5, window_bounds = array<i64: 1, 32>}, {pipeline_mode = #tpu.pipeline_mode<synchronous>, transform_indices = @transform_6, window_bounds = array<i64: 32, 128>}, {pipeline_mode = #tpu.pipeline_mode<synchronous>, transform_indices = @transform_7, window_bounds = array<i64: 1, 128>}, {pipeline_mode = #tpu.pipeline_mode<synchronous>, transform_indices = @transform_8, window_bounds = array<i64: 128, 32>}, {pipeline_mode = #tpu.pipeline_mode<synchronous>, transform_indices = @transform_9, window_bounds = array<i64: 1, 32>}, {pipeline_mode = #tpu.pipeline_mode<synchronous>, transform_indices = @transform_10, window_bounds = array<i64: 1, 32>}, {pipeline_mode = #tpu.pipeline_mode<synchronous>, transform_indices = @transform_11, window_bounds = array<i64: 1, 32>}, {transform_indices = @transform_12, window_bounds = array<i64: 1, 8, 32>}]} {
    %c0 = arith.constant 0 : index
    %c0_0 = arith.constant 0 : index
    %c0_1 = arith.constant 0 : index
    %0 = vector.load %arg1[%c0, %c0_0, %c0_1] : memref<1x8x32xf32, #tpu.memory_space<vmem>>, vector<1x8x32xf32>
    %1 = vector.shape_cast %0 : vector<1x8x32xf32> to vector<8x32xf32>
    %c0_2 = arith.constant 0 : index
    %c0_3 = arith.constant 0 : index
    %2 = vector.load %arg2[%c0_2, %c0_3] : memref<32x96xf32, #tpu.memory_space<vmem>>, vector<32x96xf32>
    %cst = arith.constant dense<0.000000e+00> : vector<8x96xf32>
    %3 = tpu.matmul %1, %2, %cst {dimension_numbers = #tpu.dot_dimension_numbers<[1], [0], [0], [1], [0, 0, 1, 1], [], []>} : vector<8x32xf32>, vector<32x96xf32>, vector<8x96xf32> -> vector<8x96xf32>
    %4 = vector.extract_strided_slice %3 {offsets = [0, 0], sizes = [8, 32], strides = [1, 1]} : vector<8x96xf32> to vector<8x32xf32>
    %5 = vector.shape_cast %4 : vector<8x32xf32> to vector<1x8x32xf32>
    %6 = vector.extract_strided_slice %3 {offsets = [0, 32], sizes = [8, 32], strides = [1, 1]} : vector<8x96xf32> to vector<8x32xf32>
    %7 = vector.shape_cast %6 : vector<8x32xf32> to vector<1x8x32xf32>
    %8 = vector.extract_strided_slice %3 {offsets = [0, 64], sizes = [8, 32], strides = [1, 1]} : vector<8x96xf32> to vector<8x32xf32>
    %9 = vector.shape_cast %8 : vector<8x32xf32> to vector<1x8x32xf32>
    %10 = tpu.iota {dimensions = array<i32: 0>} : vector<8x8xi32>
    %11 = tpu.iota {dimensions = array<i32: 1>} : vector<8x8xi32>
    %12 = arith.cmpi sge, %10, %11 : vector<8x8xi32>
    %13 = vector.extract_strided_slice %5 {offsets = [0, 0, 0], sizes = [1, 8, 8], strides = [1, 1, 1]} : vector<1x8x32xf32> to vector<1x8x8xf32>
    %14 = vector.extract_strided_slice %7 {offsets = [0, 0, 0], sizes = [1, 8, 8], strides = [1, 1, 1]} : vector<1x8x32xf32> to vector<1x8x8xf32>
    %15 = vector.extract_strided_slice %9 {offsets = [0, 0, 0], sizes = [1, 8, 8], strides = [1, 1, 1]} : vector<1x8x32xf32> to vector<1x8x8xf32>
    "tpu.trace_start"() <{level = 10 : i32, message = "btd,bsd->bts"}> : () -> ()
    %cst_4 = arith.constant dense<0.000000e+00> : vector<1x8x8xf32>
    %16 = tpu.matmul %13, %14, %cst_4 {dimension_numbers = #tpu.dot_dimension_numbers<[2], [2], [1], [1], [0, 0, 0, 1, 1, 1], [0], [0]>} : vector<1x8x8xf32>, vector<1x8x8xf32>, vector<1x8x8xf32> -> vector<1x8x8xf32>
    "tpu.trace_stop"() : () -> ()
    %cst_5 = arith.constant 0.353553385 : f32
    %17 = vector.broadcast %cst_5 : f32 to vector<1x8x8xf32>
    %18 = arith.mulf %16, %17 : vector<1x8x8xf32>
    %cst_6 = arith.constant 0xFF800000 : f32
    %19 = vector.shape_cast %12 : vector<8x8xi1> to vector<1x8x8xi1>
    %20 = vector.broadcast %cst_6 : f32 to vector<1x8x8xf32>
    %21 = arith.select %19, %18, %20 : vector<1x8x8xi1>, vector<1x8x8xf32>
    %cst_7 = arith.constant dense<0xFF800000> : vector<1x8xf32>
    %22 = vector.multi_reduction <maximumf>, %21, %cst_7 [2] : vector<1x8x8xf32> to vector<1x8xf32>
    %23 = vector.shape_cast %22 : vector<1x8xf32> to vector<1x8x1xf32>
    %24 = vector.broadcast %23 : vector<1x8x1xf32> to vector<1x8x8xf32>
    %25 = arith.subf %21, %24 : vector<1x8x8xf32>
    %26 = math.exp %25 : vector<1x8x8xf32>
    %cst_8 = arith.constant dense<0.000000e+00> : vector<1x8xf32>
    %27 = vector.multi_reduction <add>, %26, %cst_8 [2] : vector<1x8x8xf32> to vector<1x8xf32>
    %28 = vector.shape_cast %27 : vector<1x8xf32> to vector<1x8x1xf32>
    %29 = tpu.reciprocal %28 : vector<1x8x1xf32> -> vector<1x8x1xf32>
    %30 = vector.broadcast %29 : vector<1x8x1xf32> to vector<1x8x8xf32>
    %31 = arith.mulf %26, %30 : vector<1x8x8xf32>
    "tpu.trace_start"() <{level = 10 : i32, message = "bts,bsd->btd"}> : () -> ()
    %cst_9 = arith.constant dense<0.000000e+00> : vector<1x8x8xf32>
    %32 = tpu.matmul %31, %15, %cst_9 {dimension_numbers = #tpu.dot_dimension_numbers<[2], [1], [1], [2], [0, 0, 0, 1, 1, 2], [0], [0]>} : vector<1x8x8xf32>, vector<1x8x8xf32>, vector<1x8x8xf32> -> vector<1x8x8xf32>
    "tpu.trace_stop"() : () -> ()
    %33 = vector.extract_strided_slice %5 {offsets = [0, 0, 8], sizes = [1, 8, 8], strides = [1, 1, 1]} : vector<1x8x32xf32> to vector<1x8x8xf32>
    %34 = vector.extract_strided_slice %7 {offsets = [0, 0, 8], sizes = [1, 8, 8], strides = [1, 1, 1]} : vector<1x8x32xf32> to vector<1x8x8xf32>
    %35 = vector.extract_strided_slice %9 {offsets = [0, 0, 8], sizes = [1, 8, 8], strides = [1, 1, 1]} : vector<1x8x32xf32> to vector<1x8x8xf32>
    "tpu.trace_start"() <{level = 10 : i32, message = "btd,bsd->bts"}> : () -> ()
    %cst_10 = arith.constant dense<0.000000e+00> : vector<1x8x8xf32>
    %36 = tpu.matmul %33, %34, %cst_10 {dimension_numbers = #tpu.dot_dimension_numbers<[2], [2], [1], [1], [0, 0, 0, 1, 1, 1], [0], [0]>} : vector<1x8x8xf32>, vector<1x8x8xf32>, vector<1x8x8xf32> -> vector<1x8x8xf32>
    "tpu.trace_stop"() : () -> ()
    %cst_11 = arith.constant 0.353553385 : f32
    %37 = vector.broadcast %cst_11 : f32 to vector<1x8x8xf32>
    %38 = arith.mulf %36, %37 : vector<1x8x8xf32>
    %cst_12 = arith.constant 0xFF800000 : f32
    %39 = vector.shape_cast %12 : vector<8x8xi1> to vector<1x8x8xi1>
    %40 = vector.broadcast %cst_12 : f32 to vector<1x8x8xf32>
    %41 = arith.select %39, %38, %40 : vector<1x8x8xi1>, vector<1x8x8xf32>
    %cst_13 = arith.constant dense<0xFF800000> : vector<1x8xf32>
    %42 = vector.multi_reduction <maximumf>, %41, %cst_13 [2] : vector<1x8x8xf32> to vector<1x8xf32>
    %43 = vector.shape_cast %42 : vector<1x8xf32> to vector<1x8x1xf32>
    %44 = vector.broadcast %43 : vector<1x8x1xf32> to vector<1x8x8xf32>
    %45 = arith.subf %41, %44 : vector<1x8x8xf32>
    %46 = math.exp %45 : vector<1x8x8xf32>
    %cst_14 = arith.constant dense<0.000000e+00> : vector<1x8xf32>
    %47 = vector.multi_reduction <add>, %46, %cst_14 [2] : vector<1x8x8xf32> to vector<1x8xf32>
    %48 = vector.shape_cast %47 : vector<1x8xf32> to vector<1x8x1xf32>
    %49 = tpu.reciprocal %48 : vector<1x8x1xf32> -> vector<1x8x1xf32>
    %50 = vector.broadcast %49 : vector<1x8x1xf32> to vector<1x8x8xf32>
    %51 = arith.mulf %46, %50 : vector<1x8x8xf32>
    "tpu.trace_start"() <{level = 10 : i32, message = "bts,bsd->btd"}> : () -> ()
    %cst_15 = arith.constant dense<0.000000e+00> : vector<1x8x8xf32>
    %52 = tpu.matmul %51, %35, %cst_15 {dimension_numbers = #tpu.dot_dimension_numbers<[2], [1], [1], [2], [0, 0, 0, 1, 1, 2], [0], [0]>} : vector<1x8x8xf32>, vector<1x8x8xf32>, vector<1x8x8xf32> -> vector<1x8x8xf32>
    "tpu.trace_stop"() : () -> ()
    %53 = vector.extract_strided_slice %5 {offsets = [0, 0, 16], sizes = [1, 8, 8], strides = [1, 1, 1]} : vector<1x8x32xf32> to vector<1x8x8xf32>
    %54 = vector.extract_strided_slice %7 {offsets = [0, 0, 16], sizes = [1, 8, 8], strides = [1, 1, 1]} : vector<1x8x32xf32> to vector<1x8x8xf32>
    %55 = vector.extract_strided_slice %9 {offsets = [0, 0, 16], sizes = [1, 8, 8], strides = [1, 1, 1]} : vector<1x8x32xf32> to vector<1x8x8xf32>
    "tpu.trace_start"() <{level = 10 : i32, message = "btd,bsd->bts"}> : () -> ()
    %cst_16 = arith.constant dense<0.000000e+00> : vector<1x8x8xf32>
    %56 = tpu.matmul %53, %54, %cst_16 {dimension_numbers = #tpu.dot_dimension_numbers<[2], [2], [1], [1], [0, 0, 0, 1, 1, 1], [0], [0]>} : vector<1x8x8xf32>, vector<1x8x8xf32>, vector<1x8x8xf32> -> vector<1x8x8xf32>
    "tpu.trace_stop"() : () -> ()
    %cst_17 = arith.constant 0.353553385 : f32
    %57 = vector.broadcast %cst_17 : f32 to vector<1x8x8xf32>
    %58 = arith.mulf %56, %57 : vector<1x8x8xf32>
    %cst_18 = arith.constant 0xFF800000 : f32
    %59 = vector.shape_cast %12 : vector<8x8xi1> to vector<1x8x8xi1>
    %60 = vector.broadcast %cst_18 : f32 to vector<1x8x8xf32>
    %61 = arith.select %59, %58, %60 : vector<1x8x8xi1>, vector<1x8x8xf32>
    %cst_19 = arith.constant dense<0xFF800000> : vector<1x8xf32>
    %62 = vector.multi_reduction <maximumf>, %61, %cst_19 [2] : vector<1x8x8xf32> to vector<1x8xf32>
    %63 = vector.shape_cast %62 : vector<1x8xf32> to vector<1x8x1xf32>
    %64 = vector.broadcast %63 : vector<1x8x1xf32> to vector<1x8x8xf32>
    %65 = arith.subf %61, %64 : vector<1x8x8xf32>
    %66 = math.exp %65 : vector<1x8x8xf32>
    %cst_20 = arith.constant dense<0.000000e+00> : vector<1x8xf32>
    %67 = vector.multi_reduction <add>, %66, %cst_20 [2] : vector<1x8x8xf32> to vector<1x8xf32>
    %68 = vector.shape_cast %67 : vector<1x8xf32> to vector<1x8x1xf32>
    %69 = tpu.reciprocal %68 : vector<1x8x1xf32> -> vector<1x8x1xf32>
    %70 = vector.broadcast %69 : vector<1x8x1xf32> to vector<1x8x8xf32>
    %71 = arith.mulf %66, %70 : vector<1x8x8xf32>
    "tpu.trace_start"() <{level = 10 : i32, message = "bts,bsd->btd"}> : () -> ()
    %cst_21 = arith.constant dense<0.000000e+00> : vector<1x8x8xf32>
    %72 = tpu.matmul %71, %55, %cst_21 {dimension_numbers = #tpu.dot_dimension_numbers<[2], [1], [1], [2], [0, 0, 0, 1, 1, 2], [0], [0]>} : vector<1x8x8xf32>, vector<1x8x8xf32>, vector<1x8x8xf32> -> vector<1x8x8xf32>
    "tpu.trace_stop"() : () -> ()
    %73 = vector.extract_strided_slice %5 {offsets = [0, 0, 24], sizes = [1, 8, 8], strides = [1, 1, 1]} : vector<1x8x32xf32> to vector<1x8x8xf32>
    %74 = vector.extract_strided_slice %7 {offsets = [0, 0, 24], sizes = [1, 8, 8], strides = [1, 1, 1]} : vector<1x8x32xf32> to vector<1x8x8xf32>
    %75 = vector.extract_strided_slice %9 {offsets = [0, 0, 24], sizes = [1, 8, 8], strides = [1, 1, 1]} : vector<1x8x32xf32> to vector<1x8x8xf32>
    "tpu.trace_start"() <{level = 10 : i32, message = "btd,bsd->bts"}> : () -> ()
    %cst_22 = arith.constant dense<0.000000e+00> : vector<1x8x8xf32>
    %76 = tpu.matmul %73, %74, %cst_22 {dimension_numbers = #tpu.dot_dimension_numbers<[2], [2], [1], [1], [0, 0, 0, 1, 1, 1], [0], [0]>} : vector<1x8x8xf32>, vector<1x8x8xf32>, vector<1x8x8xf32> -> vector<1x8x8xf32>
    "tpu.trace_stop"() : () -> ()
    %cst_23 = arith.constant 0.353553385 : f32
    %77 = vector.broadcast %cst_23 : f32 to vector<1x8x8xf32>
    %78 = arith.mulf %76, %77 : vector<1x8x8xf32>
    %cst_24 = arith.constant 0xFF800000 : f32
    %79 = vector.shape_cast %12 : vector<8x8xi1> to vector<1x8x8xi1>
    %80 = vector.broadcast %cst_24 : f32 to vector<1x8x8xf32>
    %81 = arith.select %79, %78, %80 : vector<1x8x8xi1>, vector<1x8x8xf32>
    %cst_25 = arith.constant dense<0xFF800000> : vector<1x8xf32>
    %82 = vector.multi_reduction <maximumf>, %81, %cst_25 [2] : vector<1x8x8xf32> to vector<1x8xf32>
    %83 = vector.shape_cast %82 : vector<1x8xf32> to vector<1x8x1xf32>
    %84 = vector.broadcast %83 : vector<1x8x1xf32> to vector<1x8x8xf32>
    %85 = arith.subf %81, %84 : vector<1x8x8xf32>
    %86 = math.exp %85 : vector<1x8x8xf32>
    %cst_26 = arith.constant dense<0.000000e+00> : vector<1x8xf32>
    %87 = vector.multi_reduction <add>, %86, %cst_26 [2] : vector<1x8x8xf32> to vector<1x8xf32>
    %88 = vector.shape_cast %87 : vector<1x8xf32> to vector<1x8x1xf32>
    %89 = tpu.reciprocal %88 : vector<1x8x1xf32> -> vector<1x8x1xf32>
    %90 = vector.broadcast %89 : vector<1x8x1xf32> to vector<1x8x8xf32>
    %91 = arith.mulf %86, %90 : vector<1x8x8xf32>
    "tpu.trace_start"() <{level = 10 : i32, message = "bts,bsd->btd"}> : () -> ()
    %cst_27 = arith.constant dense<0.000000e+00> : vector<1x8x8xf32>
    %92 = tpu.matmul %91, %75, %cst_27 {dimension_numbers = #tpu.dot_dimension_numbers<[2], [1], [1], [2], [0, 0, 0, 1, 1, 2], [0], [0]>} : vector<1x8x8xf32>, vector<1x8x8xf32>, vector<1x8x8xf32> -> vector<1x8x8xf32>
    "tpu.trace_stop"() : () -> ()
    %93 = tpu.concatenate %32, %52, %72, %92 in 2 : vector<1x8x8xf32>, vector<1x8x8xf32>, vector<1x8x8xf32>, vector<1x8x8xf32> -> vector<1x8x32xf32>
    %94 = vector.shape_cast %93 : vector<1x8x32xf32> to vector<8x32xf32>
    %c0_28 = arith.constant 0 : index
    %c0_29 = arith.constant 0 : index
    %95 = vector.load %arg3[%c0_28, %c0_29] : memref<32x32xf32, #tpu.memory_space<vmem>>, vector<32x32xf32>
    %cst_30 = arith.constant dense<0.000000e+00> : vector<8x32xf32>
    %96 = tpu.matmul %94, %95, %cst_30 {dimension_numbers = #tpu.dot_dimension_numbers<[1], [0], [0], [1], [0, 0, 1, 1], [], []>} : vector<8x32xf32>, vector<32x32xf32>, vector<8x32xf32> -> vector<8x32xf32>
    %c0_31 = arith.constant 0 : index
    %c0_32 = arith.constant 0 : index
    %97 = vector.load %arg4[%c0_31, %c0_32] : memref<1x32xf32, #tpu.memory_space<vmem>>, vector<1x32xf32>
    %98 = vector.broadcast %97 : vector<1x32xf32> to vector<8x32xf32>
    %99 = arith.addf %96, %98 : vector<8x32xf32>
    %100 = arith.addf %1, %99 : vector<8x32xf32>
    %c0_33 = arith.constant 0 : index
    %c0_34 = arith.constant 0 : index
    %101 = vector.load %arg5[%c0_33, %c0_34] : memref<1x32xf32, #tpu.memory_space<vmem>>, vector<1x32xf32>
    %c0_35 = arith.constant 0 : index
    %c0_36 = arith.constant 0 : index
    %102 = vector.load %arg6[%c0_35, %c0_36] : memref<1x32xf32, #tpu.memory_space<vmem>>, vector<1x32xf32>
    %cst_37 = arith.constant dense<0.000000e+00> : vector<8xf32>
    %103 = vector.multi_reduction <add>, %100, %cst_37 [1] : vector<8x32xf32> to vector<8xf32>
    %104 = vector.shape_cast %103 : vector<8xf32> to vector<8x1xf32>
    %cst_38 = arith.constant 3.200000e+01 : f32
    %105 = vector.broadcast %cst_38 : f32 to vector<8x1xf32>
    %106 = arith.divf %104, %105 : vector<8x1xf32>
    %107 = vector.broadcast %106 : vector<8x1xf32> to vector<8x32xf32>
    %108 = arith.subf %100, %107 : vector<8x32xf32>
    %109 = arith.mulf %108, %108 : vector<8x32xf32>
    %cst_39 = arith.constant dense<0.000000e+00> : vector<8xf32>
    %110 = vector.multi_reduction <add>, %109, %cst_39 [1] : vector<8x32xf32> to vector<8xf32>
    %111 = vector.shape_cast %110 : vector<8xf32> to vector<8x1xf32>
    %cst_40 = arith.constant 3.200000e+01 : f32
    %112 = vector.broadcast %cst_40 : f32 to vector<8x1xf32>
    %113 = arith.divf %111, %112 : vector<8x1xf32>
    %114 = vector.broadcast %106 : vector<8x1xf32> to vector<8x32xf32>
    %115 = arith.subf %100, %114 : vector<8x32xf32>
    %cst_41 = arith.constant 9.99999974E-6 : f32
    %116 = vector.broadcast %cst_41 : f32 to vector<8x1xf32>
    %117 = arith.addf %113, %116 : vector<8x1xf32>
    %118 = math.rsqrt %117 : vector<8x1xf32>
    %119 = vector.broadcast %118 : vector<8x1xf32> to vector<8x32xf32>
    %120 = arith.mulf %115, %119 : vector<8x32xf32>
    %121 = vector.broadcast %101 : vector<1x32xf32> to vector<8x32xf32>
    %122 = arith.mulf %120, %121 : vector<8x32xf32>
    %123 = vector.broadcast %102 : vector<1x32xf32> to vector<8x32xf32>
    %124 = arith.addf %122, %123 : vector<8x32xf32>
    %c0_42 = arith.constant 0 : index
    %c0_43 = arith.constant 0 : index
    %125 = vector.load %arg7[%c0_42, %c0_43] : memref<32x128xf32, #tpu.memory_space<vmem>>, vector<32x128xf32>
    %cst_44 = arith.constant dense<0.000000e+00> : vector<8x128xf32>
    %126 = tpu.matmul %124, %125, %cst_44 {dimension_numbers = #tpu.dot_dimension_numbers<[1], [0], [0], [1], [0, 0, 1, 1], [], []>} : vector<8x32xf32>, vector<32x128xf32>, vector<8x128xf32> -> vector<8x128xf32>
    %c0_45 = arith.constant 0 : index
    %c0_46 = arith.constant 0 : index
    %127 = vector.load %arg8[%c0_45, %c0_46] : memref<1x128xf32, #tpu.memory_space<vmem>>, vector<1x128xf32>
    %128 = vector.broadcast %127 : vector<1x128xf32> to vector<8x128xf32>
    %129 = arith.addf %126, %128 : vector<8x128xf32>
    %cst_47 = arith.constant 0.000000e+00 : f32
    %130 = vector.broadcast %cst_47 : f32 to vector<8x128xf32>
    %131 = arith.maximumf %129, %130 : vector<8x128xf32>
    %c0_48 = arith.constant 0 : index
    %c0_49 = arith.constant 0 : index
    %132 = vector.load %arg9[%c0_48, %c0_49] : memref<128x32xf32, #tpu.memory_space<vmem>>, vector<128x32xf32>
    %cst_50 = arith.constant dense<0.000000e+00> : vector<8x32xf32>
    %133 = tpu.matmul %131, %132, %cst_50 {dimension_numbers = #tpu.dot_dimension_numbers<[1], [0], [0], [1], [0, 0, 1, 1], [], []>} : vector<8x128xf32>, vector<128x32xf32>, vector<8x32xf32> -> vector<8x32xf32>
    %c0_51 = arith.constant 0 : index
    %c0_52 = arith.constant 0 : index
    %134 = vector.load %arg10[%c0_51, %c0_52] : memref<1x32xf32, #tpu.memory_space<vmem>>, vector<1x32xf32>
    %135 = vector.broadcast %134 : vector<1x32xf32> to vector<8x32xf32>
    %136 = arith.addf %133, %135 : vector<8x32xf32>
    %137 = arith.addf %124, %136 : vector<8x32xf32>
    %c0_53 = arith.constant 0 : index
    %c0_54 = arith.constant 0 : index
    %138 = vector.load %arg11[%c0_53, %c0_54] : memref<1x32xf32, #tpu.memory_space<vmem>>, vector<1x32xf32>
    %c0_55 = arith.constant 0 : index
    %c0_56 = arith.constant 0 : index
    %139 = vector.load %arg12[%c0_55, %c0_56] : memref<1x32xf32, #tpu.memory_space<vmem>>, vector<1x32xf32>
    %cst_57 = arith.constant dense<0.000000e+00> : vector<8xf32>
    %140 = vector.multi_reduction <add>, %137, %cst_57 [1] : vector<8x32xf32> to vector<8xf32>
    %141 = vector.shape_cast %140 : vector<8xf32> to vector<8x1xf32>
    %cst_58 = arith.constant 3.200000e+01 : f32
    %142 = vector.broadcast %cst_58 : f32 to vector<8x1xf32>
    %143 = arith.divf %141, %142 : vector<8x1xf32>
    %144 = vector.broadcast %143 : vector<8x1xf32> to vector<8x32xf32>
    %145 = arith.subf %137, %144 : vector<8x32xf32>
    %146 = arith.mulf %145, %145 : vector<8x32xf32>
    %cst_59 = arith.constant dense<0.000000e+00> : vector<8xf32>
    %147 = vector.multi_reduction <add>, %146, %cst_59 [1] : vector<8x32xf32> to vector<8xf32>
    %148 = vector.shape_cast %147 : vector<8xf32> to vector<8x1xf32>
    %cst_60 = arith.constant 3.200000e+01 : f32
    %149 = vector.broadcast %cst_60 : f32 to vector<8x1xf32>
    %150 = arith.divf %148, %149 : vector<8x1xf32>
    %151 = vector.broadcast %143 : vector<8x1xf32> to vector<8x32xf32>
    %152 = arith.subf %137, %151 : vector<8x32xf32>
    %cst_61 = arith.constant 9.99999974E-6 : f32
    %153 = vector.broadcast %cst_61 : f32 to vector<8x1xf32>
    %154 = arith.addf %150, %153 : vector<8x1xf32>
    %155 = math.rsqrt %154 : vector<8x1xf32>
    %156 = vector.broadcast %155 : vector<8x1xf32> to vector<8x32xf32>
    %157 = arith.mulf %152, %156 : vector<8x32xf32>
    %158 = vector.broadcast %138 : vector<1x32xf32> to vector<8x32xf32>
    %159 = arith.mulf %157, %158 : vector<8x32xf32>
    %160 = vector.broadcast %139 : vector<1x32xf32> to vector<8x32xf32>
    %161 = arith.addf %159, %160 : vector<8x32xf32>
    %162 = vector.shape_cast %161 : vector<8x32xf32> to vector<1x8x32xf32>
    %c0_62 = arith.constant 0 : index
    %c0_63 = arith.constant 0 : index
    %c0_64 = arith.constant 0 : index
    %163 = vector.load %arg13[%c0_62, %c0_63, %c0_64] : memref<1x8x32xf32, #tpu.memory_space<vmem>>, vector<1x8x32xf32>
    tpu.vector_store %arg13[%c0_62, %c0_63, %c0_64], %162 {strides = array<i32>} : memref<1x8x32xf32, #tpu.memory_space<vmem>>, vector<1x8x32xf32>,
    return
  }
  func.func @transform_0(%arg0: i32) -> (i32, i32, i32) {
    %c0_i32 = arith.constant 0 : i32
    %c0_i32_0 = arith.constant 0 : i32
    %c0_i32_1 = arith.constant 0 : i32
    return %arg0, %c0_i32, %c0_i32_0 : i32, i32, i32
  }
  func.func @transform_1(%arg0: i32) -> (i32, i32) {
    %c0_i32 = arith.constant 0 : i32
    %c0_i32_0 = arith.constant 0 : i32
    %c0_i32_1 = arith.constant 0 : i32
    return %c0_i32, %c0_i32_0 : i32, i32
  }
  func.func @transform_2(%arg0: i32) -> (i32, i32) {
    %c0_i32 = arith.constant 0 : i32
    %c0_i32_0 = arith.constant 0 : i32
    %c0_i32_1 = arith.constant 0 : i32
    return %c0_i32, %c0_i32_0 : i32, i32
  }
  func.func @transform_3(%arg0: i32) -> (i32, i32) {
    %c0_i32 = arith.constant 0 : i32
    %c0_i32_0 = arith.constant 0 : i32
    %c0_i32_1 = arith.constant 0 : i32
    return %c0_i32, %c0_i32_0 : i32, i32
  }
  func.func @transform_4(%arg0: i32) -> (i32, i32) {
    %c0_i32 = arith.constant 0 : i32
    %c0_i32_0 = arith.constant 0 : i32
    %c0_i32_1 = arith.constant 0 : i32
    return %c0_i32, %c0_i32_0 : i32, i32
  }
  func.func @transform_5(%arg0: i32) -> (i32, i32) {
    %c0_i32 = arith.constant 0 : i32
    %c0_i32_0 = arith.constant 0 : i32
    %c0_i32_1 = arith.constant 0 : i32
    return %c0_i32, %c0_i32_0 : i32, i32
  }
  func.func @transform_6(%arg0: i32) -> (i32, i32) {
    %c0_i32 = arith.constant 0 : i32
    %c0_i32_0 = arith.constant 0 : i32
    %c0_i32_1 = arith.constant 0 : i32
    return %c0_i32, %c0_i32_0 : i32, i32
  }
  func.func @transform_7(%arg0: i32) -> (i32, i32) {
    %c0_i32 = arith.constant 0 : i32
    %c0_i32_0 = arith.constant 0 : i32
    %c0_i32_1 = arith.constant 0 : i32
    return %c0_i32, %c0_i32_0 : i32, i32
  }
  func.func @transform_8(%arg0: i32) -> (i32, i32) {
    %c0_i32 = arith.constant 0 : i32
    %c0_i32_0 = arith.constant 0 : i32
    %c0_i32_1 = arith.constant 0 : i32
    return %c0_i32, %c0_i32_0 : i32, i32
  }
  func.func @transform_9(%arg0: i32) -> (i32, i32) {
    %c0_i32 = arith.constant 0 : i32
    %c0_i32_0 = arith.constant 0 : i32
    %c0_i32_1 = arith.constant 0 : i32
    return %c0_i32, %c0_i32_0 : i32, i32
  }
  func.func @transform_10(%arg0: i32) -> (i32, i32) {
    %c0_i32 = arith.constant 0 : i32
    %c0_i32_0 = arith.constant 0 : i32
    %c0_i32_1 = arith.constant 0 : i32
    return %c0_i32, %c0_i32_0 : i32, i32
  }
  func.func @transform_11(%arg0: i32) -> (i32, i32) {
    %c0_i32 = arith.constant 0 : i32
    %c0_i32_0 = arith.constant 0 : i32
    %c0_i32_1 = arith.constant 0 : i32
    return %c0_i32, %c0_i32_0 : i32, i32
  }
  func.func @transform_12(%arg0: i32) -> (i32, i32, i32) {
    %c0_i32 = arith.constant 0 : i32
    %c0_i32_0 = arith.constant 0 : i32
    %c0_i32_1 = arith.constant 0 : i32
    return %arg0, %c0_i32, %c0_i32_0 : i32, i32, i32
  }
}

</mosaic_0001>

<llo_original>
// kernel: tpu_custom_call.1
$region0: #{tpu_custom_call.1}
  #allocation0 [shape = 'u32[]', space=smem, size = 0x4, offset = 0x4, fixed_abs, tag = 'smem constant byte address 0x4 - core index']
  #allocation1 [shape = 'u32[144,128]{1,0:T(1,128)}', space=vmem, size = 0x12000, scoped, tag = 'internal scratch']
  %s0 = inlined_call_operand.vmem [shape: f32[2,8,32], index: 0, kind: input, shape index: {}]
  %s1 = inlined_call_operand.vmem [shape: f32[32,96], index: 1, kind: input, shape index: {}]
  %s2 = inlined_call_operand.vmem [shape: f32[32,32], index: 2, kind: input, shape index: {}]
  %s3 = inlined_call_operand.vmem [shape: f32[1,32], index: 3, kind: input, shape index: {}]
  %s4 = inlined_call_operand.vmem [shape: f32[1,32], index: 4, kind: input, shape index: {}]
  %s5 = inlined_call_operand.vmem [shape: f32[1,32], index: 5, kind: input, shape index: {}]
  %s6 = inlined_call_operand.vmem [shape: f32[32,128], index: 6, kind: input, shape index: {}]
  %s7 = inlined_call_operand.vmem [shape: f32[1,128], index: 7, kind: input, shape index: {}]
  %s8 = inlined_call_operand.vmem [shape: f32[128,32], index: 8, kind: input, shape index: {}]
  %s9 = inlined_call_operand.vmem [shape: f32[1,32], index: 9, kind: input, shape index: {}]
  %s10 = inlined_call_operand.vmem [shape: f32[1,32], index: 10, kind: input, shape index: {}]
  %s11 = inlined_call_operand.vmem [shape: f32[1,32], index: 11, kind: input, shape index: {}]
  %s12 = inlined_call_operand.hbm [shape: f32[2,8,32], index: 12, kind: output, shape index: {}]
  %s13 = sld [smem:[#allocation0]]
  $region81: #{tpu_custom_call.1} parent=0
    _
  %s15 = ssub.s32 1, %s13
  %s16 = scalar_select 0, %s15, %s13
  $region1: #{tpu_custom_call.1} parent=0
    #allocation2 [shape = 'u8[8192]{0}', space=vmem, size = 0x2000, scoped, tag = 'output window, operand 0']
    #allocation3 [shape = 's32[2]{0}', space=sflag, size = 0x8, scoped, tag = 'scoped memory for tpu_custom_call.1']
    %17 = vsyncpa [#allocation3], 0
    %s18 = scalar_lea.sflag [#allocation3], 1
    %19 = vsyncpa %s18, 0
    loop: start=0, step=1, limit=4
    $region2: #{tpu_custom_call.1} parent=1 // loop_pre_header
      _
    $region3: #{tpu_custom_call.1} parent=1 // loop_header
      %s21 = sphi 0, %s25
      %p22 = scmp.ge.s32.totalorder %s21, 4
      %s31 = sphi 0, %s33
      %s34 = sphi 0, %s31
      %s35 = sphi 0, %s34
      %s51 = sphi 0, %s35
      %s55 = sphi 0, %s55
      %s57 = sphi 0, %s55
      %s58 = sphi 0, %s57
      %s72 = sphi 0, %s58
      %s76 = sphi 0, %s76
      %s78 = sphi 0, %s76
      %s79 = sphi 0, %s78
      %s93 = sphi 0, %s79
      %s97 = sphi 0, %s97
      %s99 = sphi 0, %s97
      %s100 = sphi 0, %s99
      %s114 = sphi 0, %s100
      %s118 = sphi 0, %s118
      %s120 = sphi 0, %s118
      %s121 = sphi 0, %s120
      %s135 = sphi 0, %s121
      %s139 = sphi 0, %s139
      %s141 = sphi 0, %s139
      %s142 = sphi 0, %s141
      %s156 = sphi 0, %s142
      %s160 = sphi 0, %s160
      %s162 = sphi 0, %s160
      %s163 = sphi 0, %s162
      %s177 = sphi 0, %s163
      %s181 = sphi 0, %s181
      %s183 = sphi 0, %s181
      %s184 = sphi 0, %s183
      %s198 = sphi 0, %s184
      %s202 = sphi 0, %s202
      %s204 = sphi 0, %s202
      %s205 = sphi 0, %s204
      %s219 = sphi 0, %s205
      %s223 = sphi 0, %s223
      %s225 = sphi 0, %s223
      %s226 = sphi 0, %s225
      %s240 = sphi 0, %s226
      %s244 = sphi 0, %s244
      %s246 = sphi 0, %s244
      %s247 = sphi 0, %s246
      %s261 = sphi 0, %s247
      %s265 = sphi 0, %s265
      %s267 = sphi 0, %s265
      %s268 = sphi 0, %s267
      %s282 = sphi 0, %s268
      %s288 = sphi 0, %s290
      %s291 = sphi 0, %s288
      %s292 = sphi 0, %s291
      %s308 = sphi 0, %s292
    $region4: #{tpu_custom_call.1} parent=1 // loop_header_branch
      %24 = sbr.rel (%p22) target = $region8
    $region5: #{tpu_custom_call.1} parent=1 // loop_body
      %s26 = ssub.s32 %s21, 1
      %s27 = ssub.s32 %s21, 2
      %s28 = sadd.s32 %s21, 1
      %s29 = ssub.s32 %s21, %s28
      %p30 = scmp.eq.s32.totalorder %s29, 0
      %s32 = sadd.s32 %s31, 1
      %s33 = scalar_select %p30, %s31, %s32
      %p36 = pneg %p30
      %p37 = scmp.eq.s32.totalorder %s21, 1
      %p38 = por %p36, %p37
      %p39 = scmp.ne.s32.totalorder %s31, %s34
      %p40 = scmp.eq.s32.totalorder %s21, 0
      %p41 = por %p39, %p40
      %p42 = scmp.ne.s32.totalorder %s31, %s34
      %p43 = scmp.eq.s32.totalorder %s26, 1
      %p44 = por %p42, %p43
      %p45 = scmp.ne.s32.totalorder %s34, %s35
      %p46 = scmp.eq.s32.totalorder %s26, 0
      %p47 = por %p45, %p46
      %p48 = scmp.ne.s32.totalorder %s34, %s35
      %p49 = scmp.eq.s32.totalorder %s27, 1
      %p50 = por %p48, %p49
      %p52 = scmp.ne.s32.totalorder %s35, %s51
      %p53 = scmp.eq.s32.totalorder %s27, 0
      %p54 = por %p52, %p53
      %s56 = sadd.s32 %s55, 1
      %p59 = scmp.eq.s32.totalorder %s21, 1
      %p60 = scmp.ne.s32.totalorder %s55, %s57
      %p61 = scmp.eq.s32.totalorder %s21, 0
      %p62 = por %p60, %p61
      %p63 = scmp.ne.s32.totalorder %s55, %s57
      %p64 = scmp.eq.s32.totalorder %s26, 1
      %p65 = por %p63, %p64
      %p66 = scmp.ne.s32.totalorder %s57, %s58
      %p67 = scmp.eq.s32.totalorder %s26, 0
      %p68 = por %p66, %p67
      %p69 = scmp.ne.s32.totalorder %s57, %s58
      %p70 = scmp.eq.s32.totalorder %s27, 1
      %p71 = por %p69, %p70
      %p73 = scmp.ne.s32.totalorder %s58, %s72
      %p74 = scmp.eq.s32.totalorder %s27, 0
      %p75 = por %p73, %p74
      %s77 = sadd.s32 %s76, 1
      %p80 = scmp.eq.s32.totalorder %s21, 1
      %p81 = scmp.ne.s32.totalorder %s76, %s78
      %p82 = scmp.eq.s32.totalorder %s21, 0
      %p83 = por %p81, %p82
      %p84 = scmp.ne.s32.totalorder %s76, %s78
      %p85 = scmp.eq.s32.totalorder %s26, 1
      %p86 = por %p84, %p85
      %p87 = scmp.ne.s32.totalorder %s78, %s79
      %p88 = scmp.eq.s32.totalorder %s26, 0
      %p89 = por %p87, %p88
      %p90 = scmp.ne.s32.totalorder %s78, %s79
      %p91 = scmp.eq.s32.totalorder %s27, 1
      %p92 = por %p90, %p91
      %p94 = scmp.ne.s32.totalorder %s79, %s93
      %p95 = scmp.eq.s32.totalorder %s27, 0
      %p96 = por %p94, %p95
      %s98 = sadd.s32 %s97, 1
      %p101 = scmp.eq.s32.totalorder %s21, 1
      %p102 = scmp.ne.s32.totalorder %s97, %s99
      %p103 = scmp.eq.s32.totalorder %s21, 0
      %p104 = por %p102, %p103
      %p105 = scmp.ne.s32.totalorder %s97, %s99
      %p106 = scmp.eq.s32.totalorder %s26, 1
      %p107 = por %p105, %p106
      %p108 = scmp.ne.s32.totalorder %s99, %s100
      %p109 = scmp.eq.s32.totalorder %s26, 0
      %p110 = por %p108, %p109
      %p111 = scmp.ne.s32.totalorder %s99, %s100
      %p112 = scmp.eq.s32.totalorder %s27, 1
      %p113 = por %p111, %p112
      %p115 = scmp.ne.s32.totalorder %s100, %s114
      %p116 = scmp.eq.s32.totalorder %s27, 0
      %p117 = por %p115, %p116
      %s119 = sadd.s32 %s118, 1
      %p122 = scmp.eq.s32.totalorder %s21, 1
      %p123 = scmp.ne.s32.totalorder %s118, %s120
      %p124 = scmp.eq.s32.totalorder %s21, 0
      %p125 = por %p123, %p124
      %p126 = scmp.ne.s32.totalorder %s118, %s120
      %p127 = scmp.eq.s32.totalorder %s26, 1
      %p128 = por %p126, %p127
      %p129 = scmp.ne.s32.totalorder %s120, %s121
      %p130 = scmp.eq.s32.totalorder %s26, 0
      %p131 = por %p129, %p130
      %p132 = scmp.ne.s32.totalorder %s120, %s121
      %p133 = scmp.eq.s32.totalorder %s27, 1
      %p134 = por %p132, %p133
      %p136 = scmp.ne.s32.totalorder %s121, %s135
      %p137 = scmp.eq.s32.totalorder %s27, 0
      %p138 = por %p136, %p137
      %s140 = sadd.s32 %s139, 1
      %p143 = scmp.eq.s32.totalorder %s21, 1
      %p144 = scmp.ne.s32.totalorder %s139, %s141
      %p145 = scmp.eq.s32.totalorder %s21, 0
      %p146 = por %p144, %p145
      %p147 = scmp.ne.s32.totalorder %s139, %s141
      %p148 = scmp.eq.s32.totalorder %s26, 1
      %p149 = por %p147, %p148
      %p150 = scmp.ne.s32.totalorder %s141, %s142
      %p151 = scmp.eq.s32.totalorder %s26, 0
      %p152 = por %p150, %p151
      %p153 = scmp.ne.s32.totalorder %s141, %s142
      %p154 = scmp.eq.s32.totalorder %s27, 1
      %p155 = por %p153, %p154
      %p157 = scmp.ne.s32.totalorder %s142, %s156
      %p158 = scmp.eq.s32.totalorder %s27, 0
      %p159 = por %p157, %p158
      %s161 = sadd.s32 %s160, 1
      %p164 = scmp.eq.s32.totalorder %s21, 1
      %p165 = scmp.ne.s32.totalorder %s160, %s162
      %p166 = scmp.eq.s32.totalorder %s21, 0
      %p167 = por %p165, %p166
      %p168 = scmp.ne.s32.totalorder %s160, %s162
      %p169 = scmp.eq.s32.totalorder %s26, 1
      %p170 = por %p168, %p169
      %p171 = scmp.ne.s32.totalorder %s162, %s163
      %p172 = scmp.eq.s32.totalorder %s26, 0
      %p173 = por %p171, %p172
      %p174 = scmp.ne.s32.totalorder %s162, %s163
      %p175 = scmp.eq.s32.totalorder %s27, 1
      %p176 = por %p174, %p175
      %p178 = scmp.ne.s32.totalorder %s163, %s177
      %p179 = scmp.eq.s32.totalorder %s27, 0
      %p180 = por %p178, %p179
      %s182 = sadd.s32 %s181, 1
      %p185 = scmp.eq.s32.totalorder %s21, 1
      %p186 = scmp.ne.s32.totalorder %s181, %s183
      %p187 = scmp.eq.s32.totalorder %s21, 0
      %p188 = por %p186, %p187
      %p189 = scmp.ne.s32.totalorder %s181, %s183
      %p190 = scmp.eq.s32.totalorder %s26, 1
      %p191 = por %p189, %p190
      %p192 = scmp.ne.s32.totalorder %s183, %s184
      %p193 = scmp.eq.s32.totalorder %s26, 0
      %p194 = por %p192, %p193
      %p195 = scmp.ne.s32.totalorder %s183, %s184
      %p196 = scmp.eq.s32.totalorder %s27, 1
      %p197 = por %p195, %p196
      %p199 = scmp.ne.s32.totalorder %s184, %s198
      %p200 = scmp.eq.s32.totalorder %s27, 0
      %p201 = por %p199, %p200
      %s203 = sadd.s32 %s202, 1
      %p206 = scmp.eq.s32.totalorder %s21, 1
      %p207 = scmp.ne.s32.totalorder %s202, %s204
      %p208 = scmp.eq.s32.totalorder %s21, 0
      %p209 = por %p207, %p208
      %p210 = scmp.ne.s32.totalorder %s202, %s204
      %p211 = scmp.eq.s32.totalorder %s26, 1
      %p212 = por %p210, %p211
      %p213 = scmp.ne.s32.totalorder %s204, %s205
      %p214 = scmp.eq.s32.totalorder %s26, 0
      %p215 = por %p213, %p214
      %p216 = scmp.ne.s32.totalorder %s204, %s205
      %p217 = scmp.eq.s32.totalorder %s27, 1
      %p218 = por %p216, %p217
      %p220 = scmp.ne.s32.totalorder %s205, %s219
      %p221 = scmp.eq.s32.totalorder %s27, 0
      %p222 = por %p220, %p221
      %s224 = sadd.s32 %s223, 1
      %p227 = scmp.eq.s32.totalorder %s21, 1
      %p228 = scmp.ne.s32.totalorder %s223, %s225
      %p229 = scmp.eq.s32.totalorder %s21, 0
      %p230 = por %p228, %p229
      %p231 = scmp.ne.s32.totalorder %s223, %s225
      %p232 = scmp.eq.s32.totalorder %s26, 1
      %p233 = por %p231, %p232
      %p234 = scmp.ne.s32.totalorder %s225, %s226
      %p235 = scmp.eq.s32.totalorder %s26, 0
      %p236 = por %p234, %p235
      %p237 = scmp.ne.s32.totalorder %s225, %s226
      %p238 = scmp.eq.s32.totalorder %s27, 1
      %p239 = por %p237, %p238
      %p241 = scmp.ne.s32.totalorder %s226, %s240
      %p242 = scmp.eq.s32.totalorder %s27, 0
      %p243 = por %p241, %p242
      %s245 = sadd.s32 %s244, 1
      %p248 = scmp.eq.s32.totalorder %s21, 1
      %p249 = scmp.ne.s32.totalorder %s244, %s246
      %p250 = scmp.eq.s32.totalorder %s21, 0
      %p251 = por %p249, %p250
      %p252 = scmp.ne.s32.totalorder %s244, %s246
      %p253 = scmp.eq.s32.totalorder %s26, 1
      %p254 = por %p252, %p253
      %p255 = scmp.ne.s32.totalorder %s246, %s247
      %p256 = scmp.eq.s32.totalorder %s26, 0
      %p257 = por %p255, %p256
      %p258 = scmp.ne.s32.totalorder %s246, %s247
      %p259 = scmp.eq.s32.totalorder %s27, 1
      %p260 = por %p258, %p259
      %p262 = scmp.ne.s32.totalorder %s247, %s261
      %p263 = scmp.eq.s32.totalorder %s27, 0
      %p264 = por %p262, %p263
      %s266 = sadd.s32 %s265, 1
      %p269 = scmp.eq.s32.totalorder %s21, 1
      %p270 = scmp.ne.s32.totalorder %s265, %s267
      %p271 = scmp.eq.s32.totalorder %s21, 0
      %p272 = por %p270, %p271
      %p273 = scmp.ne.s32.totalorder %s265, %s267
      %p274 = scmp.eq.s32.totalorder %s26, 1
      %p275 = por %p273, %p274
      %p276 = scmp.ne.s32.totalorder %s267, %s268
      %p277 = scmp.eq.s32.totalorder %s26, 0
      %p278 = por %p276, %p277
      %p279 = scmp.ne.s32.totalorder %s267, %s268
      %p280 = scmp.eq.s32.totalorder %s27, 1
      %p281 = por %p279, %p280
      %p283 = scmp.ne.s32.totalorder %s268, %s282
      %p284 = scmp.eq.s32.totalorder %s27, 0
      %p285 = por %p283, %p284
      %s286 = ssub.s32 %s21, %s28
      %p287 = scmp.eq.s32.totalorder %s286, 0
      %s289 = sadd.s32 %s288, 1
      %s290 = scalar_select %p287, %s288, %s289
      %p293 = pneg %p287
      %p294 = scmp.eq.s32.totalorder %s21, 1
      %p295 = por %p293, %p294
      %p296 = scmp.ne.s32.totalorder %s288, %s291
      %p297 = scmp.eq.s32.totalorder %s21, 0
      %p298 = por %p296, %p297
      %p299 = scmp.ne.s32.totalorder %s288, %s291
      %p300 = scmp.eq.s32.totalorder %s26, 1
      %p301 = por %p299, %p300
      %p302 = scmp.ne.s32.totalorder %s291, %s292
      %p303 = scmp.eq.s32.totalorder %s26, 0
      %p304 = por %p302, %p303
      %p305 = scmp.ne.s32.totalorder %s291, %s292
      %p306 = scmp.eq.s32.totalorder %s27, 1
      %p307 = por %p305, %p306
      %p309 = scmp.ne.s32.totalorder %s292, %s308
      %p310 = scmp.eq.s32.totalorder %s27, 0
      %p311 = por %p309, %p310
      %p312 = scmp.le.s32.totalorder 1, %s21
      %p313 = scmp.lt.s32.totalorder %s21, 3
      %p314 = pnand %p312, %p313
      %p315 = pneg %p314
      // Predicated region
      $region9: #{tpu_custom_call.1} parent=5 // pred_check
        _
      $region10: #{tpu_custom_call.1} parent=5 // pred_check_branch
        %317 = sbr.rel (%p314) target = $region12
      $region11: #{tpu_custom_call.1} parent=5 // pred_region
        %s318 = ssub.s32 %s21, 1
        // Predicated region
        $region13: #{tpu_custom_call.1} parent=11 // pred_check
          %p319 = pneg %p68
        $region14: #{tpu_custom_call.1} parent=11 // pred_check_branch
          %321 = sbr.rel (%p319) target = $region16
        $region15: #{tpu_custom_call.1} parent=11 // pred_region
          _
        $region16: #{tpu_custom_call.1} parent=11 // pred_fallthru
          _
        // Predicated region
        $region17: #{tpu_custom_call.1} parent=11 // pred_check
          %p322 = pneg %p89
        $region18: #{tpu_custom_call.1} parent=11 // pred_check_branch
          %324 = sbr.rel (%p322) target = $region20
        $region19: #{tpu_custom_call.1} parent=11 // pred_region
          _
        $region20: #{tpu_custom_call.1} parent=11 // pred_fallthru
          _
        // Predicated region
        $region21: #{tpu_custom_call.1} parent=11 // pred_check
          %p325 = pneg %p110
        $region22: #{tpu_custom_call.1} parent=11 // pred_check_branch
          %327 = sbr.rel (%p325) target = $region24
        $region23: #{tpu_custom_call.1} parent=11 // pred_region
          _
        $region24: #{tpu_custom_call.1} parent=11 // pred_fallthru
          _
        // Predicated region
        $region25: #{tpu_custom_call.1} parent=11 // pred_check
          %p328 = pneg %p131
        $region26: #{tpu_custom_call.1} parent=11 // pred_check_branch
          %330 = sbr.rel (%p328) target = $region28
        $region27: #{tpu_custom_call.1} parent=11 // pred_region
          _
        $region28: #{tpu_custom_call.1} parent=11 // pred_fallthru
          _
        // Predicated region
        $region29: #{tpu_custom_call.1} parent=11 // pred_check
          %p331 = pneg %p152
        $region30: #{tpu_custom_call.1} parent=11 // pred_check_branch
          %333 = sbr.rel (%p331) target = $region32
        $region31: #{tpu_custom_call.1} parent=11 // pred_region
          _
        $region32: #{tpu_custom_call.1} parent=11 // pred_fallthru
          _
        // Predicated region
        $region33: #{tpu_custom_call.1} parent=11 // pred_check
          %p334 = pneg %p173
        $region34: #{tpu_custom_call.1} parent=11 // pred_check_branch
          %336 = sbr.rel (%p334) target = $region36
        $region35: #{tpu_custom_call.1} parent=11 // pred_region
          _
        $region36: #{tpu_custom_call.1} parent=11 // pred_fallthru
          _
        // Predicated region
        $region37: #{tpu_custom_call.1} parent=11 // pred_check
          %p337 = pneg %p194
        $region38: #{tpu_custom_call.1} parent=11 // pred_check_branch
          %339 = sbr.rel (%p337) target = $region40
        $region39: #{tpu_custom_call.1} parent=11 // pred_region
          _
        $region40: #{tpu_custom_call.1} parent=11 // pred_fallthru
          _
        // Predicated region
        $region41: #{tpu_custom_call.1} parent=11 // pred_check
          %p340 = pneg %p215
        $region42: #{tpu_custom_call.1} parent=11 // pred_check_branch
          %342 = sbr.rel (%p340) target = $region44
        $region43: #{tpu_custom_call.1} parent=11 // pred_region
          _
        $region44: #{tpu_custom_call.1} parent=11 // pred_fallthru
          _
        // Predicated region
        $region45: #{tpu_custom_call.1} parent=11 // pred_check
          %p343 = pneg %p236
        $region46: #{tpu_custom_call.1} parent=11 // pred_check_branch
          %345 = sbr.rel (%p343) target = $region48
        $region47: #{tpu_custom_call.1} parent=11 // pred_region
          _
        $region48: #{tpu_custom_call.1} parent=11 // pred_fallthru
          _
        // Predicated region
        $region49: #{tpu_custom_call.1} parent=11 // pred_check
          %p346 = pneg %p257
        $region50: #{tpu_custom_call.1} parent=11 // pred_check_branch
          %348 = sbr.rel (%p346) target = $region52
        $region51: #{tpu_custom_call.1} parent=11 // pred_region
          _
        $region52: #{tpu_custom_call.1} parent=11 // pred_fallthru
          _
        // Predicated region
        $region53: #{tpu_custom_call.1} parent=11 // pred_check
          %p349 = pneg %p278
        $region54: #{tpu_custom_call.1} parent=11 // pred_check_branch
          %351 = sbr.rel (%p349) target = $region56
        $region55: #{tpu_custom_call.1} parent=11 // pred_region
          _
        $region56: #{tpu_custom_call.1} parent=11 // pred_fallthru
          _
      $region12: #{tpu_custom_call.1} parent=5 // pred_fallthru
        _
      %p352 = scmp.lt.s32.totalorder %s21, 2
      // Predicated region
      $region57: #{tpu_custom_call.1} parent=5 // pred_check
        %p353 = pneg %p352
      $region58: #{tpu_custom_call.1} parent=5 // pred_check_branch
        %355 = sbr.rel (%p353) target = $region60
      $region59: #{tpu_custom_call.1} parent=5 // pred_region
        // Predicated region
        $region61: #{tpu_custom_call.1} parent=59 // pred_check
          %p356 = pneg %p41
        $region62: #{tpu_custom_call.1} parent=59 // pred_check_branch
          %358 = sbr.rel (%p356) target = $region64
        $region63: #{tpu_custom_call.1} parent=59 // pred_region
          %p359 = scmp.lt.s32.totalorder %s21, 1
          %s360 = scalar_select %p359, %s21, 1
          %s361 = smul.addr %s360, 8
          %s362 = scalar_lea.vmem %s0, %s361
        $region64: #{tpu_custom_call.1} parent=59 // pred_fallthru
          _
      $region60: #{tpu_custom_call.1} parent=5 // pred_fallthru
        _
      %p363 = scmp.le.s32.totalorder 1, %s21
      %p364 = scmp.lt.s32.totalorder %s21, 3
      %p365 = pnand %p363, %p364
      %p366 = pneg %p365
      // Predicated region
      $region65: #{tpu_custom_call.1} parent=5 // pred_check
        _
      $region66: #{tpu_custom_call.1} parent=5 // pred_check_branch
        %368 = sbr.rel (%p365) target = $region68
      $region67: #{tpu_custom_call.1} parent=5 // pred_region
        %s369 = ssub.s32 %s21, 1
        %p370 = scmp.lt.s32.totalorder %s26, 1
        %s371 = scalar_select %p370, %s26, 1
        %s372 = smul.addr %s371, 8
        %s373 = scalar_lea.vmem %s0, %s372
        %p374 = pneg %p47
        %p375 = pneg %p44
        %p376 = pneg %p68
        %p377 = pneg %p65
        %p378 = pneg %p89
        %p379 = pneg %p86
        %p380 = pneg %p110
        %p381 = pneg %p107
        %p382 = pneg %p131
        %p383 = pneg %p128
        %p384 = pneg %p152
        %p385 = pneg %p149
        %p386 = pneg %p173
        %p387 = pneg %p170
        %p388 = pneg %p194
        %p389 = pneg %p191
        %p390 = pneg %p215
        %p391 = pneg %p212
        %p392 = pneg %p236
        %p393 = pneg %p233
        %p394 = pneg %p257
        %p395 = pneg %p254
        %p396 = pneg %p278
        %p397 = pneg %p275
        %p398 = pneg %p304
        %p399 = pneg %p301
        %s400 = sand.u32 %s291, 1
        %s401 = scalar_lea.sflag [#allocation3], %s400
        %s402 = sand.u32 %s291, 1
        %s403 = smul.addr %s402, 8
        %s404 = scalar_lea.vmem [#allocation2], %s403
        %p405 = scmp.lt.s32.totalorder %s26, 1
        %s406 = scalar_select %p405, %s26, 1
        %s407 = smul.addr %s406, 8
        %s408 = scalar_lea.vmem %s0, %s407
        %v409 = vld [vmem:[%s408] sm:$0xff]
        %v410 = vld [vmem:[%s1] sm:$0xff]
        %v411 = vld [vmem:[%s1 + $0x8] sm:$0xff]
        %v412 = vld [vmem:[%s1 + $0x10] sm:$0xff]
        %v413 = vld [vmem:[%s1 + $0x18] sm:$0xff]
        %vm414 = vcmask 261120
        %v416 = vsel %vm414, %v409, 0
        %418 = vmatprep.subr.mxu0 0.0
        %419 = vmatpush1.msra.mxu0 %v410
        %420 = vmatprep.subr.mxu0 0.0
        %421 = vmatpush1.msra.mxu0 %v411
        %422 = vmatprep.subr.mxu0 0.0
        %423 = vmatpush1.msra.mxu0 %v412
        %424 = vmatprep.subr.mxu0 0.0
        %425 = vmatpush1.msra.mxu0 %v413
        %426 = vmatprep.subr.mxu0 0.0
        %427 = vmatpush1.msra.mxu0 0.0
        %428 = vmatprep.subr.mxu0 0.0
        %429 = vmatpush1.msra.mxu0 0.0
        %430 = vmatprep.subr.mxu0 0.0
        %431 = vmatpush1.msra.mxu0 0.0
        %432 = vmatprep.subr.mxu0 0.0
        %433 = vmatpush1.msra.mxu0 0.0
        %434 = vmatprep.subr.mxu0 0.0
        %435 = vmatpush1.msra.mxu0 0.0
        %436 = vmatprep.subr.mxu0 0.0
        %437 = vmatpush1.msra.mxu0 0.0
        %438 = vmatprep.subr.mxu0 0.0
        %439 = vmatpush1.msra.mxu0 0.0
        %440 = vmatprep.subr.mxu0 0.0
        %441 = vmatpush1.msra.mxu0 0.0
        %442 = vmatprep.subr.mxu0 0.0
        %443 = vmatpush1.msra.mxu0 0.0
        %444 = vmatprep.subr.mxu0 0.0
        %445 = vmatpush1.msra.mxu0 0.0
        %446 = vmatprep.subr.mxu0 0.0
        %447 = vmatpush1.msra.mxu0 0.0
        %448 = vmatprep.subr.mxu0 0.0
        %449 = vmatpush1.msra.mxu0 0.0
        %450 = vmatprep.subr.mxu0 0.0
        %451 = vmatpush1.msra.mxu0 0.0
        %452 = vmatprep.subr.mxu0 0.0
        %453 = vmatpush1.msra.mxu0 0.0
        %454 = vmatprep.subr.mxu0 0.0
        %455 = vmatpush1.msra.mxu0 0.0
        %456 = vmatprep.subr.mxu0 0.0
        %457 = vmatpush1.msra.mxu0 0.0
        %458 = vmatprep.subr.mxu0 0.0
        %459 = vmatpush1.msra.mxu0 0.0
        %460 = vmatprep.subr.mxu0 0.0
        %461 = vmatpush1.msra.mxu0 0.0
        %462 = vmatprep.subr.mxu0 0.0
        %463 = vmatpush1.msra.mxu0 0.0
        %464 = vmatprep.subr.mxu0 0.0
        %465 = vmatpush1.msra.mxu0 0.0
        %466 = vmatprep.subr.mxu0 0.0
        %467 = vmatpush1.msra.mxu0 0.0
        %468 = vmatprep.subr.mxu0 0.0
        %469 = vmatpush1.msra.mxu0 0.0
        %470 = vmatprep.subr.mxu0 0.0
        %471 = vmatpush1.msra.mxu0 0.0
        %472 = vmatprep.subr.mxu0 0.0
        %473 = vmatpush1.msra.mxu0 0.0
        %474 = vmatprep.subr.mxu0 0.0
        %475 = vmatpush1.msra.mxu0 0.0
        %476 = vmatprep.subr.mxu0 0.0
        %477 = vmatpush1.msra.mxu0 0.0
        %478 = vmatprep.subr.mxu0 0.0
        %479 = vmatpush1.msra.mxu0 0.0
        %480 = vmatprep.subr.mxu0 0.0
        %481 = vmatpush1.msra.mxu0 0.0
        %482 = vmatprep.mubr.f32.mxu0 0.0
        %483 = vmatmul.mubr.f32.gmra.mrb[0].mxu0 %v416
        %v484 = vpop.f32.mrb[0].mxu0
        %v485 = vadd.f32 0.0, %v484
        %v486 = vpop.f32.mrb[0].mxu0
        %487 = vdwg.mxu0
        %v488 = vlaneseq
        %v489 = vshrl.u32 %v488, 7
        %v490 = vlaneseq
        %v491 = vand.u32 %v490, 127
        %vm492 = vcmp.ge.s32.totalorder %v489, %v491
        %494 = vrot.lane.b32.xlu0 %v485, 96
        %v495 = vpop.permute.xlu0 %494
        %vm496 = vcmask 64512
        %v497 = vsel %vm496, %v485, 0
        %v499 = vsel %vm496, %v495, 0
        %501 = vmatprep.subr.mxu0 0.0
        %502 = vmatpush1.xpose.msra.mxu0 %v499
        %503 = vmatprep.subr.mxu0 0.0
        %504 = vmatpush1.xpose.msra.mxu0 0.0
        %505 = vmatprep.subr.mxu0 0.0
        %506 = vmatpush1.xpose.msra.mxu0 0.0
        %507 = vmatprep.subr.mxu0 0.0
        %508 = vmatpush1.xpose.msra.mxu0 0.0
        %509 = vmatprep.subr.mxu0 0.0
        %510 = vmatpush1.xpose.msra.mxu0 0.0
        %511 = vmatprep.subr.mxu0 0.0
        %512 = vmatpush1.xpose.msra.mxu0 0.0
        %513 = vmatprep.subr.mxu0 0.0
        %514 = vmatpush1.xpose.msra.mxu0 0.0
        %515 = vmatprep.subr.mxu0 0.0
        %516 = vmatpush1.xpose.msra.mxu0 0.0
        %517 = vmatprep.subr.mxu0 0.0
        %518 = vmatpush1.xpose.msra.mxu0 0.0
        %519 = vmatprep.subr.mxu0 0.0
        %520 = vmatpush1.xpose.msra.mxu0 0.0
        %521 = vmatprep.subr.mxu0 0.0
        %522 = vmatpush1.xpose.msra.mxu0 0.0
        %523 = vmatprep.subr.mxu0 0.0
        %524 = vmatpush1.xpose.msra.mxu0 0.0
        %525 = vmatprep.subr.mxu0 0.0
        %526 = vmatpush1.xpose.msra.mxu0 0.0
        %527 = vmatprep.subr.mxu0 0.0
        %528 = vmatpush1.xpose.msra.mxu0 0.0
        %529 = vmatprep.subr.mxu0 0.0
        %530 = vmatpush1.xpose.msra.mxu0 0.0
        %531 = vmatprep.subr.mxu0 0.0
        %532 = vmatpush1.xpose.msra.mxu0 0.0
        %533 = vmatprep.subr.mxu0 0.0
        %534 = vmatpush1.xpose.msra.mxu0 0.0
        %535 = vmatprep.subr.mxu0 0.0
        %536 = vmatpush1.xpose.msra.mxu0 0.0
        %537 = vmatprep.subr.mxu0 0.0
        %538 = vmatpush1.xpose.msra.mxu0 0.0
        %539 = vmatprep.subr.mxu0 0.0
        %540 = vmatpush1.xpose.msra.mxu0 0.0
        %541 = vmatprep.subr.mxu0 0.0
        %542 = vmatpush1.xpose.msra.mxu0 0.0
        %543 = vmatprep.subr.mxu0 0.0
        %544 = vmatpush1.xpose.msra.mxu0 0.0
        %545 = vmatprep.subr.mxu0 0.0
        %546 = vmatpush1.xpose.msra.mxu0 0.0
        %547 = vmatprep.subr.mxu0 0.0
        %548 = vmatpush1.xpose.msra.mxu0 0.0
        %549 = vmatprep.subr.mxu0 0.0
        %550 = vmatpush1.xpose.msra.mxu0 0.0
        %551 = vmatprep.subr.mxu0 0.0
        %552 = vmatpush1.xpose.msra.mxu0 0.0
        %553 = vmatprep.subr.mxu0 0.0
        %554 = vmatpush1.xpose.msra.mxu0 0.0
        %555 = vmatprep.subr.mxu0 0.0
        %556 = vmatpush1.xpose.msra.mxu0 0.0
        %557 = vmatprep.subr.mxu0 0.0
        %558 = vmatpush1.xpose.msra.mxu0 0.0
        %559 = vmatprep.subr.mxu0 0.0
        %560 = vmatpush1.xpose.msra.mxu0 0.0
        %561 = vmatprep.subr.mxu0 0.0
        %562 = vmatpush1.xpose.msra.mxu0 0.0
        %563 = vmatprep.subr.mxu0 0.0
        %564 = vmatpush1.xpose.msra.mxu0 0.0
        %565 = vmatprep.mubr.f32.mxu0 0.0
        %566 = vmatmul.mubr.f32.gmra.mrb[0].mxu0 %v497
        %v567 = vpop.f32.mrb[0].mxu0
        %v568 = vadd.f32 0.0, %v567
        %v569 = vpop.f32.mrb[0].mxu0
        %570 = vdwg.mxu0
        %v571 = vmul.f32 %v568, 0.35355338
        %v572 = vsel %vm492, %v571, -inf
        %v573 = vsel %vm496, %v572, -inf
        %574 = vmax.xlane.f32.xlu0 %v573
        %v575 = vpop.xlane.xlu0 %574
        %v576 = vsub.f32 %v572, %v575
        %v577 = vmul.f32 %v576, 1.442695
        %v578 = vpow.pop %v577
        %v579 = vsel %vm496, %v578, 0.0
        %580 = vadd.xlane.f32.xlu0 %v579
        %v581 = vpop.xlane.xlu0 %580
        %v582 = vrcp.pop %v581
        %v583 = vmul.f32 %v578, %v582
        %584 = vrot.lane.b32.xlu0 %v485, 64
        %v585 = vpop.permute.xlu0 %584
        %v588 = vsel %vm496, %v583, 0
        %590 = vmatprep.subr.mxu0 0.0
        %591 = vmatpush1.msra.mxu0 %v585
        %592 = vmatprep.subr.mxu0 0.0
        %593 = vmatpush1.msra.mxu0 0.0
        %594 = vmatprep.subr.mxu0 0.0
        %595 = vmatpush1.msra.mxu0 0.0
        %596 = vmatprep.subr.mxu0 0.0
        %597 = vmatpush1.msra.mxu0 0.0
        %598 = vmatprep.subr.mxu0 0.0
        %599 = vmatpush1.msra.mxu0 0.0
        %600 = vmatprep.subr.mxu0 0.0
        %601 = vmatpush1.msra.mxu0 0.0
        %602 = vmatprep.subr.mxu0 0.0
        %603 = vmatpush1.msra.mxu0 0.0
        %604 = vmatprep.subr.mxu0 0.0
        %605 = vmatpush1.msra.mxu0 0.0
        %606 = vmatprep.subr.mxu0 0.0
        %607 = vmatpush1.msra.mxu0 0.0
        %608 = vmatprep.subr.mxu0 0.0
        %609 = vmatpush1.msra.mxu0 0.0
        %610 = vmatprep.subr.mxu0 0.0
        %611 = vmatpush1.msra.mxu0 0.0
        %612 = vmatprep.subr.mxu0 0.0
        %613 = vmatpush1.msra.mxu0 0.0
        %614 = vmatprep.subr.mxu0 0.0
        %615 = vmatpush1.msra.mxu0 0.0
        %616 = vmatprep.subr.mxu0 0.0
        %617 = vmatpush1.msra.mxu0 0.0
        %618 = vmatprep.subr.mxu0 0.0
        %619 = vmatpush1.msra.mxu0 0.0
        %620 = vmatprep.subr.mxu0 0.0
        %621 = vmatpush1.msra.mxu0 0.0
        %622 = vmatprep.subr.mxu0 0.0
        %623 = vmatpush1.msra.mxu0 0.0
        %624 = vmatprep.subr.mxu0 0.0
        %625 = vmatpush1.msra.mxu0 0.0
        %626 = vmatprep.subr.mxu0 0.0
        %627 = vmatpush1.msra.mxu0 0.0
        %628 = vmatprep.subr.mxu0 0.0
        %629 = vmatpush1.msra.mxu0 0.0
        %630 = vmatprep.subr.mxu0 0.0
        %631 = vmatpush1.msra.mxu0 0.0
        %632 = vmatprep.subr.mxu0 0.0
        %633 = vmatpush1.msra.mxu0 0.0
        %634 = vmatprep.subr.mxu0 0.0
        %635 = vmatpush1.msra.mxu0 0.0
        %636 = vmatprep.subr.mxu0 0.0
        %637 = vmatpush1.msra.mxu0 0.0
        %638 = vmatprep.subr.mxu0 0.0
        %639 = vmatpush1.msra.mxu0 0.0
        %640 = vmatprep.subr.mxu0 0.0
        %641 = vmatpush1.msra.mxu0 0.0
        %642 = vmatprep.subr.mxu0 0.0
        %643 = vmatpush1.msra.mxu0 0.0
        %644 = vmatprep.subr.mxu0 0.0
        %645 = vmatpush1.msra.mxu0 0.0
        %646 = vmatprep.subr.mxu0 0.0
        %647 = vmatpush1.msra.mxu0 0.0
        %648 = vmatprep.subr.mxu0 0.0
        %649 = vmatpush1.msra.mxu0 0.0
        %650 = vmatprep.subr.mxu0 0.0
        %651 = vmatpush1.msra.mxu0 0.0
        %652 = vmatprep.subr.mxu0 0.0
        %653 = vmatpush1.msra.mxu0 0.0
        %654 = vmatprep.mubr.f32.mxu0 0.0
        %655 = vmatmul.mubr.f32.gmra.mrb[0].mxu0 %v588
        %v656 = vpop.f32.mrb[0].mxu0
        %v657 = vadd.f32 0.0, %v656
        %v658 = vpop.f32.mrb[0].mxu0
        %659 = vdwg.mxu0
        %660 = vrot.lane.b32.xlu0 %v485, 120
        %v661 = vpop.permute.xlu0 %660
        %662 = vrot.lane.b32.xlu0 %v485, 88
        %v663 = vpop.permute.xlu0 %662
        %v664 = vsel %vm496, %v661, 0
        %v666 = vsel %vm496, %v663, 0
        %668 = vmatprep.subr.mxu0 0.0
        %669 = vmatpush1.xpose.msra.mxu0 %v666
        %670 = vmatprep.subr.mxu0 0.0
        %671 = vmatpush1.xpose.msra.mxu0 0.0
        %672 = vmatprep.subr.mxu0 0.0
        %673 = vmatpush1.xpose.msra.mxu0 0.0
        %674 = vmatprep.subr.mxu0 0.0
        %675 = vmatpush1.xpose.msra.mxu0 0.0
        %676 = vmatprep.subr.mxu0 0.0
        %677 = vmatpush1.xpose.msra.mxu0 0.0
        %678 = vmatprep.subr.mxu0 0.0
        %679 = vmatpush1.xpose.msra.mxu0 0.0
        %680 = vmatprep.subr.mxu0 0.0
        %681 = vmatpush1.xpose.msra.mxu0 0.0
        %682 = vmatprep.subr.mxu0 0.0
        %683 = vmatpush1.xpose.msra.mxu0 0.0
        %684 = vmatprep.subr.mxu0 0.0
        %685 = vmatpush1.xpose.msra.mxu0 0.0
        %686 = vmatprep.subr.mxu0 0.0
        %687 = vmatpush1.xpose.msra.mxu0 0.0
        %688 = vmatprep.subr.mxu0 0.0
        %689 = vmatpush1.xpose.msra.mxu0 0.0
        %690 = vmatprep.subr.mxu0 0.0
        %691 = vmatpush1.xpose.msra.mxu0 0.0
        %692 = vmatprep.subr.mxu0 0.0
        %693 = vmatpush1.xpose.msra.mxu0 0.0
        %694 = vmatprep.subr.mxu0 0.0
        %695 = vmatpush1.xpose.msra.mxu0 0.0
        %696 = vmatprep.subr.mxu0 0.0
        %697 = vmatpush1.xpose.msra.mxu0 0.0
        %698 = vmatprep.subr.mxu0 0.0
        %699 = vmatpush1.xpose.msra.mxu0 0.0
        %700 = vmatprep.subr.mxu0 0.0
        %701 = vmatpush1.xpose.msra.mxu0 0.0
        %702 = vmatprep.subr.mxu0 0.0
        %703 = vmatpush1.xpose.msra.mxu0 0.0
        %704 = vmatprep.subr.mxu0 0.0
        %705 = vmatpush1.xpose.msra.mxu0 0.0
        %706 = vmatprep.subr.mxu0 0.0
        %707 = vmatpush1.xpose.msra.mxu0 0.0
        %708 = vmatprep.subr.mxu0 0.0
        %709 = vmatpush1.xpose.msra.mxu0 0.0
        %710 = vmatprep.subr.mxu0 0.0
        %711 = vmatpush1.xpose.msra.mxu0 0.0
        %712 = vmatprep.subr.mxu0 0.0
        %713 = vmatpush1.xpose.msra.mxu0 0.0
        %714 = vmatprep.subr.mxu0 0.0
        %715 = vmatpush1.xpose.msra.mxu0 0.0
        %716 = vmatprep.subr.mxu0 0.0
        %717 = vmatpush1.xpose.msra.mxu0 0.0
        %718 = vmatprep.subr.mxu0 0.0
        %719 = vmatpush1.xpose.msra.mxu0 0.0
        %720 = vmatprep.subr.mxu0 0.0
        %721 = vmatpush1.xpose.msra.mxu0 0.0
        %722 = vmatprep.subr.mxu0 0.0
        %723 = vmatpush1.xpose.msra.mxu0 0.0
        %724 = vmatprep.subr.mxu0 0.0
        %725 = vmatpush1.xpose.msra.mxu0 0.0
        %726 = vmatprep.subr.mxu0 0.0
        %727 = vmatpush1.xpose.msra.mxu0 0.0
        %728 = vmatprep.subr.mxu0 0.0
        %729 = vmatpush1.xpose.msra.mxu0 0.0
        %730 = vmatprep.subr.mxu0 0.0
        %731 = vmatpush1.xpose.msra.mxu0 0.0
        %732 = vmatprep.mubr.f32.mxu0 0.0
        %733 = vmatmul.mubr.f32.gmra.mrb[0].mxu0 %v664
        %v734 = vpop.f32.mrb[0].mxu0
        %v735 = vadd.f32 0.0, %v734
        %v736 = vpop.f32.mrb[0].mxu0
        %737 = vdwg.mxu0
        %v738 = vmul.f32 %v735, 0.35355338
        %v739 = vsel %vm492, %v738, -inf
        %v740 = vsel %vm496, %v739, -inf
        %741 = vmax.xlane.f32.xlu0 %v740
        %v742 = vpop.xlane.xlu0 %741
        %v743 = vsub.f32 %v739, %v742
        %v744 = vmul.f32 %v743, 1.442695
        %v745 = vpow.pop %v744
        %v746 = vsel %vm496, %v745, 0.0
        %747 = vadd.xlane.f32.xlu0 %v746
        %v748 = vpop.xlane.xlu0 %747
        %v749 = vrcp.pop %v748
        %v750 = vmul.f32 %v745, %v749
        %751 = vrot.lane.b32.xlu0 %v485, 56
        %v752 = vpop.permute.xlu0 %751
        %v755 = vsel %vm496, %v750, 0
        %757 = vmatprep.subr.mxu0 0.0
        %758 = vmatpush1.msra.mxu0 %v752
        %759 = vmatprep.subr.mxu0 0.0
        %760 = vmatpush1.msra.mxu0 0.0
        %761 = vmatprep.subr.mxu0 0.0
        %762 = vmatpush1.msra.mxu0 0.0
        %763 = vmatprep.subr.mxu0 0.0
        %764 = vmatpush1.msra.mxu0 0.0
        %765 = vmatprep.subr.mxu0 0.0
        %766 = vmatpush1.msra.mxu0 0.0
        %767 = vmatprep.subr.mxu0 0.0
        %768 = vmatpush1.msra.mxu0 0.0
        %769 = vmatprep.subr.mxu0 0.0
        %770 = vmatpush1.msra.mxu0 0.0
        %771 = vmatprep.subr.mxu0 0.0
        %772 = vmatpush1.msra.mxu0 0.0
        %773 = vmatprep.subr.mxu0 0.0
        %774 = vmatpush1.msra.mxu0 0.0
        %775 = vmatprep.subr.mxu0 0.0
        %776 = vmatpush1.msra.mxu0 0.0
        %777 = vmatprep.subr.mxu0 0.0
        %778 = vmatpush1.msra.mxu0 0.0
        %779 = vmatprep.subr.mxu0 0.0
        %780 = vmatpush1.msra.mxu0 0.0
        %781 = vmatprep.subr.mxu0 0.0
        %782 = vmatpush1.msra.mxu0 0.0
        %783 = vmatprep.subr.mxu0 0.0
        %784 = vmatpush1.msra.mxu0 0.0
        %785 = vmatprep.subr.mxu0 0.0
        %786 = vmatpush1.msra.mxu0 0.0
        %787 = vmatprep.subr.mxu0 0.0
        %788 = vmatpush1.msra.mxu0 0.0
        %789 = vmatprep.subr.mxu0 0.0
        %790 = vmatpush1.msra.mxu0 0.0
        %791 = vmatprep.subr.mxu0 0.0
        %792 = vmatpush1.msra.mxu0 0.0
        %793 = vmatprep.subr.mxu0 0.0
        %794 = vmatpush1.msra.mxu0 0.0
        %795 = vmatprep.subr.mxu0 0.0
        %796 = vmatpush1.msra.mxu0 0.0
        %797 = vmatprep.subr.mxu0 0.0
        %798 = vmatpush1.msra.mxu0 0.0
        %799 = vmatprep.subr.mxu0 0.0
        %800 = vmatpush1.msra.mxu0 0.0
        %801 = vmatprep.subr.mxu0 0.0
        %802 = vmatpush1.msra.mxu0 0.0
        %803 = vmatprep.subr.mxu0 0.0
        %804 = vmatpush1.msra.mxu0 0.0
        %805 = vmatprep.subr.mxu0 0.0
        %806 = vmatpush1.msra.mxu0 0.0
        %807 = vmatprep.subr.mxu0 0.0
        %808 = vmatpush1.msra.mxu0 0.0
        %809 = vmatprep.subr.mxu0 0.0
        %810 = vmatpush1.msra.mxu0 0.0
        %811 = vmatprep.subr.mxu0 0.0
        %812 = vmatpush1.msra.mxu0 0.0
        %813 = vmatprep.subr.mxu0 0.0
        %814 = vmatpush1.msra.mxu0 0.0
        %815 = vmatprep.subr.mxu0 0.0
        %816 = vmatpush1.msra.mxu0 0.0
        %817 = vmatprep.subr.mxu0 0.0
        %818 = vmatpush1.msra.mxu0 0.0
        %819 = vmatprep.subr.mxu0 0.0
        %820 = vmatpush1.msra.mxu0 0.0
        %821 = vmatprep.mubr.f32.mxu0 0.0
        %822 = vmatmul.mubr.f32.gmra.mrb[0].mxu0 %v755
        %v823 = vpop.f32.mrb[0].mxu0
        %v824 = vadd.f32 0.0, %v823
        %v825 = vpop.f32.mrb[0].mxu0
        %826 = vdwg.mxu0
        %827 = vrot.lane.b32.xlu0 %v485, 112
        %v828 = vpop.permute.xlu0 %827
        %829 = vrot.lane.b32.xlu0 %v485, 80
        %v830 = vpop.permute.xlu0 %829
        %v831 = vsel %vm496, %v828, 0
        %v833 = vsel %vm496, %v830, 0
        %835 = vmatprep.subr.mxu0 0.0
        %836 = vmatpush1.xpose.msra.mxu0 %v833
        %837 = vmatprep.subr.mxu0 0.0
        %838 = vmatpush1.xpose.msra.mxu0 0.0
        %839 = vmatprep.subr.mxu0 0.0
        %840 = vmatpush1.xpose.msra.mxu0 0.0
        %841 = vmatprep.subr.mxu0 0.0
        %842 = vmatpush1.xpose.msra.mxu0 0.0
        %843 = vmatprep.subr.mxu0 0.0
        %844 = vmatpush1.xpose.msra.mxu0 0.0
        %845 = vmatprep.subr.mxu0 0.0
        %846 = vmatpush1.xpose.msra.mxu0 0.0
        %847 = vmatprep.subr.mxu0 0.0
        %848 = vmatpush1.xpose.msra.mxu0 0.0
        %849 = vmatprep.subr.mxu0 0.0
        %850 = vmatpush1.xpose.msra.mxu0 0.0
        %851 = vmatprep.subr.mxu0 0.0
        %852 = vmatpush1.xpose.msra.mxu0 0.0
        %853 = vmatprep.subr.mxu0 0.0
        %854 = vmatpush1.xpose.msra.mxu0 0.0
        %855 = vmatprep.subr.mxu0 0.0
        %856 = vmatpush1.xpose.msra.mxu0 0.0
        %857 = vmatprep.subr.mxu0 0.0
        %858 = vmatpush1.xpose.msra.mxu0 0.0
        %859 = vmatprep.subr.mxu0 0.0
        %860 = vmatpush1.xpose.msra.mxu0 0.0
        %861 = vmatprep.subr.mxu0 0.0
        %862 = vmatpush1.xpose.msra.mxu0 0.0
        %863 = vmatprep.subr.mxu0 0.0
        %864 = vmatpush1.xpose.msra.mxu0 0.0
        %865 = vmatprep.subr.mxu0 0.0
        %866 = vmatpush1.xpose.msra.mxu0 0.0
        %867 = vmatprep.subr.mxu0 0.0
        %868 = vmatpush1.xpose.msra.mxu0 0.0
        %869 = vmatprep.subr.mxu0 0.0
        %870 = vmatpush1.xpose.msra.mxu0 0.0
        %871 = vmatprep.subr.mxu0 0.0
        %872 = vmatpush1.xpose.msra.mxu0 0.0
        %873 = vmatprep.subr.mxu0 0.0
        %874 = vmatpush1.xpose.msra.mxu0 0.0
        %875 = vmatprep.subr.mxu0 0.0
        %876 = vmatpush1.xpose.msra.mxu0 0.0
        %877 = vmatprep.subr.mxu0 0.0
        %878 = vmatpush1.xpose.msra.mxu0 0.0
        %879 = vmatprep.subr.mxu0 0.0
        %880 = vmatpush1.xpose.msra.mxu0 0.0
        %881 = vmatprep.subr.mxu0 0.0
        %882 = vmatpush1.xpose.msra.mxu0 0.0
        %883 = vmatprep.subr.mxu0 0.0
        %884 = vmatpush1.xpose.msra.mxu0 0.0
        %885 = vmatprep.subr.mxu0 0.0
        %886 = vmatpush1.xpose.msra.mxu0 0.0
        %887 = vmatprep.subr.mxu0 0.0
        %888 = vmatpush1.xpose.msra.mxu0 0.0
        %889 = vmatprep.subr.mxu0 0.0
        %890 = vmatpush1.xpose.msra.mxu0 0.0
        %891 = vmatprep.subr.mxu0 0.0
        %892 = vmatpush1.xpose.msra.mxu0 0.0
        %893 = vmatprep.subr.mxu0 0.0
        %894 = vmatpush1.xpose.msra.mxu0 0.0
        %895 = vmatprep.subr.mxu0 0.0
        %896 = vmatpush1.xpose.msra.mxu0 0.0
        %897 = vmatprep.subr.mxu0 0.0
        %898 = vmatpush1.xpose.msra.mxu0 0.0
        %899 = vmatprep.mubr.f32.mxu0 0.0
        %900 = vmatmul.mubr.f32.gmra.mrb[0].mxu0 %v831
        %v901 = vpop.f32.mrb[0].mxu0
        %v902 = vadd.f32 0.0, %v901
        %v903 = vpop.f32.mrb[0].mxu0
        %904 = vdwg.mxu0
        %v905 = vmul.f32 %v902, 0.35355338
        %v906 = vsel %vm492, %v905, -inf
        %v907 = vsel %vm496, %v906, -inf
        %908 = vmax.xlane.f32.xlu0 %v907
        %v909 = vpop.xlane.xlu0 %908
        %v910 = vsub.f32 %v906, %v909
        %v911 = vmul.f32 %v910, 1.442695
        %v912 = vpow.pop %v911
        %v913 = vsel %vm496, %v912, 0.0
        %914 = vadd.xlane.f32.xlu0 %v913
        %v915 = vpop.xlane.xlu0 %914
        %v916 = vrcp.pop %v915
        %v917 = vmul.f32 %v912, %v916
        %918 = vrot.lane.b32.xlu0 %v485, 48
        %v919 = vpop.permute.xlu0 %918
        %v922 = vsel %vm496, %v917, 0
        %924 = vmatprep.subr.mxu0 0.0
        %925 = vmatpush1.msra.mxu0 %v919
        %926 = vmatprep.subr.mxu0 0.0
        %927 = vmatpush1.msra.mxu0 0.0
        %928 = vmatprep.subr.mxu0 0.0
        %929 = vmatpush1.msra.mxu0 0.0
        %930 = vmatprep.subr.mxu0 0.0
        %931 = vmatpush1.msra.mxu0 0.0
        %932 = vmatprep.subr.mxu0 0.0
        %933 = vmatpush1.msra.mxu0 0.0
        %934 = vmatprep.subr.mxu0 0.0
        %935 = vmatpush1.msra.mxu0 0.0
        %936 = vmatprep.subr.mxu0 0.0
        %937 = vmatpush1.msra.mxu0 0.0
        %938 = vmatprep.subr.mxu0 0.0
        %939 = vmatpush1.msra.mxu0 0.0
        %940 = vmatprep.subr.mxu0 0.0
        %941 = vmatpush1.msra.mxu0 0.0
        %942 = vmatprep.subr.mxu0 0.0
        %943 = vmatpush1.msra.mxu0 0.0
        %944 = vmatprep.subr.mxu0 0.0
        %945 = vmatpush1.msra.mxu0 0.0
        %946 = vmatprep.subr.mxu0 0.0
        %947 = vmatpush1.msra.mxu0 0.0
        %948 = vmatprep.subr.mxu0 0.0
        %949 = vmatpush1.msra.mxu0 0.0
        %950 = vmatprep.subr.mxu0 0.0
        %951 = vmatpush1.msra.mxu0 0.0
        %952 = vmatprep.subr.mxu0 0.0
        %953 = vmatpush1.msra.mxu0 0.0
        %954 = vmatprep.subr.mxu0 0.0
        %955 = vmatpush1.msra.mxu0 0.0
        %956 = vmatprep.subr.mxu0 0.0
        %957 = vmatpush1.msra.mxu0 0.0
        %958 = vmatprep.subr.mxu0 0.0
        %959 = vmatpush1.msra.mxu0 0.0
        %960 = vmatprep.subr.mxu0 0.0
        %961 = vmatpush1.msra.mxu0 0.0
        %962 = vmatprep.subr.mxu0 0.0
        %963 = vmatpush1.msra.mxu0 0.0
        %964 = vmatprep.subr.mxu0 0.0
        %965 = vmatpush1.msra.mxu0 0.0
        %966 = vmatprep.subr.mxu0 0.0
        %967 = vmatpush1.msra.mxu0 0.0
        %968 = vmatprep.subr.mxu0 0.0
        %969 = vmatpush1.msra.mxu0 0.0
        %970 = vmatprep.subr.mxu0 0.0
        %971 = vmatpush1.msra.mxu0 0.0
        %972 = vmatprep.subr.mxu0 0.0
        %973 = vmatpush1.msra.mxu0 0.0
        %974 = vmatprep.subr.mxu0 0.0
        %975 = vmatpush1.msra.mxu0 0.0
        %976 = vmatprep.subr.mxu0 0.0
        %977 = vmatpush1.msra.mxu0 0.0
        %978 = vmatprep.subr.mxu0 0.0
        %979 = vmatpush1.msra.mxu0 0.0
        %980 = vmatprep.subr.mxu0 0.0
        %981 = vmatpush1.msra.mxu0 0.0
        %982 = vmatprep.subr.mxu0 0.0
        %983 = vmatpush1.msra.mxu0 0.0
        %984 = vmatprep.subr.mxu0 0.0
        %985 = vmatpush1.msra.mxu0 0.0
        %986 = vmatprep.subr.mxu0 0.0
        %987 = vmatpush1.msra.mxu0 0.0
        %988 = vmatprep.mubr.f32.mxu0 0.0
        %989 = vmatmul.mubr.f32.gmra.mrb[0].mxu0 %v922
        %v990 = vpop.f32.mrb[0].mxu0
        %v991 = vadd.f32 0.0, %v990
        %v992 = vpop.f32.mrb[0].mxu0
        %993 = vdwg.mxu0
        %994 = vrot.lane.b32.xlu0 %v485, 104
        %v995 = vpop.permute.xlu0 %994
        %996 = vrot.lane.b32.xlu0 %v485, 72
        %v997 = vpop.permute.xlu0 %996
        %v998 = vsel %vm496, %v995, 0
        %v1000 = vsel %vm496, %v997, 0
        %1002 = vmatprep.subr.mxu0 0.0
        %1003 = vmatpush1.xpose.msra.mxu0 %v1000
        %1004 = vmatprep.subr.mxu0 0.0
        %1005 = vmatpush1.xpose.msra.mxu0 0.0
        %1006 = vmatprep.subr.mxu0 0.0
        %1007 = vmatpush1.xpose.msra.mxu0 0.0
        %1008 = vmatprep.subr.mxu0 0.0
        %1009 = vmatpush1.xpose.msra.mxu0 0.0
        %1010 = vmatprep.subr.mxu0 0.0
        %1011 = vmatpush1.xpose.msra.mxu0 0.0
        %1012 = vmatprep.subr.mxu0 0.0
        %1013 = vmatpush1.xpose.msra.mxu0 0.0
        %1014 = vmatprep.subr.mxu0 0.0
        %1015 = vmatpush1.xpose.msra.mxu0 0.0
        %1016 = vmatprep.subr.mxu0 0.0
        %1017 = vmatpush1.xpose.msra.mxu0 0.0
        %1018 = vmatprep.subr.mxu0 0.0
        %1019 = vmatpush1.xpose.msra.mxu0 0.0
        %1020 = vmatprep.subr.mxu0 0.0
        %1021 = vmatpush1.xpose.msra.mxu0 0.0
        %1022 = vmatprep.subr.mxu0 0.0
        %1023 = vmatpush1.xpose.msra.mxu0 0.0
        %1024 = vmatprep.subr.mxu0 0.0
        %1025 = vmatpush1.xpose.msra.mxu0 0.0
        %1026 = vmatprep.subr.mxu0 0.0
        %1027 = vmatpush1.xpose.msra.mxu0 0.0
        %1028 = vmatprep.subr.mxu0 0.0
        %1029 = vmatpush1.xpose.msra.mxu0 0.0
        %1030 = vmatprep.subr.mxu0 0.0
        %1031 = vmatpush1.xpose.msra.mxu0 0.0
        %1032 = vmatprep.subr.mxu0 0.0
        %1033 = vmatpush1.xpose.msra.mxu0 0.0
        %1034 = vmatprep.subr.mxu0 0.0
        %1035 = vmatpush1.xpose.msra.mxu0 0.0
        %1036 = vmatprep.subr.mxu0 0.0
        %1037 = vmatpush1.xpose.msra.mxu0 0.0
        %1038 = vmatprep.subr.mxu0 0.0
        %1039 = vmatpush1.xpose.msra.mxu0 0.0
        %1040 = vmatprep.subr.mxu0 0.0
        %1041 = vmatpush1.xpose.msra.mxu0 0.0
        %1042 = vmatprep.subr.mxu0 0.0
        %1043 = vmatpush1.xpose.msra.mxu0 0.0
        %1044 = vmatprep.subr.mxu0 0.0
        %1045 = vmatpush1.xpose.msra.mxu0 0.0
        %1046 = vmatprep.subr.mxu0 0.0
        %1047 = vmatpush1.xpose.msra.mxu0 0.0
        %1048 = vmatprep.subr.mxu0 0.0
        %1049 = vmatpush1.xpose.msra.mxu0 0.0
        %1050 = vmatprep.subr.mxu0 0.0
        %1051 = vmatpush1.xpose.msra.mxu0 0.0
        %1052 = vmatprep.subr.mxu0 0.0
        %1053 = vmatpush1.xpose.msra.mxu0 0.0
        %1054 = vmatprep.subr.mxu0 0.0
        %1055 = vmatpush1.xpose.msra.mxu0 0.0
        %1056 = vmatprep.subr.mxu0 0.0
        %1057 = vmatpush1.xpose.msra.mxu0 0.0
        %1058 = vmatprep.subr.mxu0 0.0
        %1059 = vmatpush1.xpose.msra.mxu0 0.0
        %1060 = vmatprep.subr.mxu0 0.0
        %1061 = vmatpush1.xpose.msra.mxu0 0.0
        %1062 = vmatprep.subr.mxu0 0.0
        %1063 = vmatpush1.xpose.msra.mxu0 0.0
        %1064 = vmatprep.subr.mxu0 0.0
        %1065 = vmatpush1.xpose.msra.mxu0 0.0
        %1066 = vmatprep.mubr.f32.mxu0 0.0
        %1067 = vmatmul.mubr.f32.gmra.mrb[0].mxu0 %v998
        %v1068 = vpop.f32.mrb[0].mxu0
        %v1069 = vadd.f32 0.0, %v1068
        %v1070 = vpop.f32.mrb[0].mxu0
        %1071 = vdwg.mxu0
        %v1072 = vmul.f32 %v1069, 0.35355338
        %v1073 = vsel %vm492, %v1072, -inf
        %v1074 = vsel %vm496, %v1073, -inf
        %1075 = vmax.xlane.f32.xlu0 %v1074
        %v1076 = vpop.xlane.xlu0 %1075
        %v1077 = vsub.f32 %v1073, %v1076
        %v1078 = vmul.f32 %v1077, 1.442695
        %v1079 = vpow.pop %v1078
        %v1080 = vsel %vm496, %v1079, 0.0
        %1081 = vadd.xlane.f32.xlu0 %v1080
        %v1082 = vpop.xlane.xlu0 %1081
        %v1083 = vrcp.pop %v1082
        %v1084 = vmul.f32 %v1079, %v1083
        %1085 = vrot.lane.b32.xlu0 %v485, 40
        %v1086 = vpop.permute.xlu0 %1085
        %v1089 = vsel %vm496, %v1084, 0
        %1091 = vmatprep.subr.mxu0 0.0
        %1092 = vmatpush1.msra.mxu0 %v1086
        %1093 = vmatprep.subr.mxu0 0.0
        %1094 = vmatpush1.msra.mxu0 0.0
        %1095 = vmatprep.subr.mxu0 0.0
        %1096 = vmatpush1.msra.mxu0 0.0
        %1097 = vmatprep.subr.mxu0 0.0
        %1098 = vmatpush1.msra.mxu0 0.0
        %1099 = vmatprep.subr.mxu0 0.0
        %1100 = vmatpush1.msra.mxu0 0.0
        %1101 = vmatprep.subr.mxu0 0.0
        %1102 = vmatpush1.msra.mxu0 0.0
        %1103 = vmatprep.subr.mxu0 0.0
        %1104 = vmatpush1.msra.mxu0 0.0
        %1105 = vmatprep.subr.mxu0 0.0
        %1106 = vmatpush1.msra.mxu0 0.0
        %1107 = vmatprep.subr.mxu0 0.0
        %1108 = vmatpush1.msra.mxu0 0.0
        %1109 = vmatprep.subr.mxu0 0.0
        %1110 = vmatpush1.msra.mxu0 0.0
        %1111 = vmatprep.subr.mxu0 0.0
        %1112 = vmatpush1.msra.mxu0 0.0
        %1113 = vmatprep.subr.mxu0 0.0
        %1114 = vmatpush1.msra.mxu0 0.0
        %1115 = vmatprep.subr.mxu0 0.0
        %1116 = vmatpush1.msra.mxu0 0.0
        %1117 = vmatprep.subr.mxu0 0.0
        %1118 = vmatpush1.msra.mxu0 0.0
        %1119 = vmatprep.subr.mxu0 0.0
        %1120 = vmatpush1.msra.mxu0 0.0
        %1121 = vmatprep.subr.mxu0 0.0
        %1122 = vmatpush1.msra.mxu0 0.0
        %1123 = vmatprep.subr.mxu0 0.0
        %1124 = vmatpush1.msra.mxu0 0.0
        %1125 = vmatprep.subr.mxu0 0.0
        %1126 = vmatpush1.msra.mxu0 0.0
        %1127 = vmatprep.subr.mxu0 0.0
        %1128 = vmatpush1.msra.mxu0 0.0
        %1129 = vmatprep.subr.mxu0 0.0
        %1130 = vmatpush1.msra.mxu0 0.0
        %1131 = vmatprep.subr.mxu0 0.0
        %1132 = vmatpush1.msra.mxu0 0.0
        %1133 = vmatprep.subr.mxu0 0.0
        %1134 = vmatpush1.msra.mxu0 0.0
        %1135 = vmatprep.subr.mxu0 0.0
        %1136 = vmatpush1.msra.mxu0 0.0
        %1137 = vmatprep.subr.mxu0 0.0
        %1138 = vmatpush1.msra.mxu0 0.0
        %1139 = vmatprep.subr.mxu0 0.0
        %1140 = vmatpush1.msra.mxu0 0.0
        %1141 = vmatprep.subr.mxu0 0.0
        %1142 = vmatpush1.msra.mxu0 0.0
        %1143 = vmatprep.subr.mxu0 0.0
        %1144 = vmatpush1.msra.mxu0 0.0
        %1145 = vmatprep.subr.mxu0 0.0
        %1146 = vmatpush1.msra.mxu0 0.0
        %1147 = vmatprep.subr.mxu0 0.0
        %1148 = vmatpush1.msra.mxu0 0.0
        %1149 = vmatprep.subr.mxu0 0.0
        %1150 = vmatpush1.msra.mxu0 0.0
        %1151 = vmatprep.subr.mxu0 0.0
        %1152 = vmatpush1.msra.mxu0 0.0
        %1153 = vmatprep.subr.mxu0 0.0
        %1154 = vmatpush1.msra.mxu0 0.0
        %1155 = vmatprep.mubr.f32.mxu0 0.0
        %1156 = vmatmul.mubr.f32.gmra.mrb[0].mxu0 %v1089
        %v1157 = vpop.f32.mrb[0].mxu0
        %v1158 = vadd.f32 0.0, %v1157
        %v1159 = vpop.f32.mrb[0].mxu0
        %1160 = vdwg.mxu0
        %1162 = vrot.lane.b32.xlu0 %v824, 8
        %v1163 = vpop.permute.xlu0 %1162
        %1166 = vrot.lane.b32.xlu0 %v991, 16
        %v1167 = vpop.permute.xlu0 %1166
        %1170 = vrot.lane.b32.xlu0 %v1158, 24
        %v1171 = vpop.permute.xlu0 %1170
        %v1173 = vsel %vm496, %v657, %v1163
        %vm1174 = vcmask 130048
        %v1175 = vsel %vm1174, %v1173, %v1167
        %vm1176 = vcmask 195584
        %v1177 = vsel %vm1176, %v1175, %v1171
        %v1178 = vld [vmem:[%s2] sm:$0xff]
        %v1179 = vld [vmem:[%s2 + $0x8] sm:$0xff]
        %v1180 = vld [vmem:[%s2 + $0x10] sm:$0xff]
        %v1181 = vld [vmem:[%s2 + $0x18] sm:$0xff]
        %v1182 = vld [vmem:[%s3] sm:$0x1]
        %v1184 = vlaneseq
        %v1185 = vshrl.u32 %v1184, 7
        %v1186 = vsub.s32 0, %v1185
        %v1187 = vrot.slane %v1182, %v1186
        %v1190 = vsel %vm414, %v1177, 0
        %1192 = vmatprep.subr.mxu0 0.0
        %1193 = vmatpush1.msra.mxu0 %v1178
        %1194 = vmatprep.subr.mxu0 0.0
        %1195 = vmatpush1.msra.mxu0 %v1179
        %1196 = vmatprep.subr.mxu0 0.0
        %1197 = vmatpush1.msra.mxu0 %v1180
        %1198 = vmatprep.subr.mxu0 0.0
        %1199 = vmatpush1.msra.mxu0 %v1181
        %1200 = vmatprep.subr.mxu0 0.0
        %1201 = vmatpush1.msra.mxu0 0.0
        %1202 = vmatprep.subr.mxu0 0.0
        %1203 = vmatpush1.msra.mxu0 0.0
        %1204 = vmatprep.subr.mxu0 0.0
        %1205 = vmatpush1.msra.mxu0 0.0
        %1206 = vmatprep.subr.mxu0 0.0
        %1207 = vmatpush1.msra.mxu0 0.0
        %1208 = vmatprep.subr.mxu0 0.0
        %1209 = vmatpush1.msra.mxu0 0.0
        %1210 = vmatprep.subr.mxu0 0.0
        %1211 = vmatpush1.msra.mxu0 0.0
        %1212 = vmatprep.subr.mxu0 0.0
        %1213 = vmatpush1.msra.mxu0 0.0
        %1214 = vmatprep.subr.mxu0 0.0
        %1215 = vmatpush1.msra.mxu0 0.0
        %1216 = vmatprep.subr.mxu0 0.0
        %1217 = vmatpush1.msra.mxu0 0.0
        %1218 = vmatprep.subr.mxu0 0.0
        %1219 = vmatpush1.msra.mxu0 0.0
        %1220 = vmatprep.subr.mxu0 0.0
        %1221 = vmatpush1.msra.mxu0 0.0
        %1222 = vmatprep.subr.mxu0 0.0
        %1223 = vmatpush1.msra.mxu0 0.0
        %1224 = vmatprep.subr.mxu0 0.0
        %1225 = vmatpush1.msra.mxu0 0.0
        %1226 = vmatprep.subr.mxu0 0.0
        %1227 = vmatpush1.msra.mxu0 0.0
        %1228 = vmatprep.subr.mxu0 0.0
        %1229 = vmatpush1.msra.mxu0 0.0
        %1230 = vmatprep.subr.mxu0 0.0
        %1231 = vmatpush1.msra.mxu0 0.0
        %1232 = vmatprep.subr.mxu0 0.0
        %1233 = vmatpush1.msra.mxu0 0.0
        %1234 = vmatprep.subr.mxu0 0.0
        %1235 = vmatpush1.msra.mxu0 0.0
        %1236 = vmatprep.subr.mxu0 0.0
        %1237 = vmatpush1.msra.mxu0 0.0
        %1238 = vmatprep.subr.mxu0 0.0
        %1239 = vmatpush1.msra.mxu0 0.0
        %1240 = vmatprep.subr.mxu0 0.0
        %1241 = vmatpush1.msra.mxu0 0.0
        %1242 = vmatprep.subr.mxu0 0.0
        %1243 = vmatpush1.msra.mxu0 0.0
        %1244 = vmatprep.subr.mxu0 0.0
        %1245 = vmatpush1.msra.mxu0 0.0
        %1246 = vmatprep.subr.mxu0 0.0
        %1247 = vmatpush1.msra.mxu0 0.0
        %1248 = vmatprep.subr.mxu0 0.0
        %1249 = vmatpush1.msra.mxu0 0.0
        %1250 = vmatprep.subr.mxu0 0.0
        %1251 = vmatpush1.msra.mxu0 0.0
        %1252 = vmatprep.subr.mxu0 0.0
        %1253 = vmatpush1.msra.mxu0 0.0
        %1254 = vmatprep.subr.mxu0 0.0
        %1255 = vmatpush1.msra.mxu0 0.0
        %1256 = vmatprep.mubr.f32.mxu0 0.0
        %1257 = vmatmul.mubr.f32.gmra.mrb[0].mxu0 %v1190
        %v1258 = vpop.f32.mrb[0].mxu0
        %v1259 = vadd.f32 %v1187, %v1258
        %v1260 = vpop.f32.mrb[0].mxu0
        %1261 = vdwg.mxu0
        %v1262 = vadd.f32 %v409, %v1259
        %v1263 = vld [vmem:[%s4] sm:$0x1]
        %v1264 = vld [vmem:[%s5] sm:$0x1]
        %v1265 = vsel %vm414, %v1262, 0.0
        %1266 = vadd.xlane.f32.xlu0 %v1265
        %v1267 = vpop.xlane.xlu0 %1266
        %v1268 = vrcp.pop 32.0
        %v1269 = vmul.f32 %v1267, %v1268
        %v1270 = vsub.f32 %v1262, %v1269
        %v1271 = vmul.f32 %v1270, %v1270
        %v1272 = vsel %vm414, %v1271, 0.0
        %1273 = vadd.xlane.f32.xlu0 %v1272
        %v1274 = vpop.xlane.xlu0 %1273
        %v1275 = vmul.f32 %v1274, %v1268
        %v1276 = vadd.f32 %v1275, 1e-05
        %v1277 = vrsqrt.pop %v1276
        %v1278 = vmul.f32 %v1270, %v1277
        %v1280 = vlaneseq
        %v1281 = vshrl.u32 %v1280, 7
        %v1282 = vsub.s32 0, %v1281
        %v1283 = vrot.slane %v1263, %v1282
        %v1285 = vmul.f32 %v1278, %v1283
        %v1287 = vlaneseq
        %v1288 = vshrl.u32 %v1287, 7
        %v1289 = vsub.s32 0, %v1288
        %v1290 = vrot.slane %v1264, %v1289
        %v1292 = vadd.f32 %v1285, %v1290
        %v1293 = vld [vmem:[%s6] sm:$0xff]
        %v1294 = vld [vmem:[%s6 + $0x8] sm:$0xff]
        %v1295 = vld [vmem:[%s6 + $0x10] sm:$0xff]
        %v1296 = vld [vmem:[%s6 + $0x18] sm:$0xff]
        %v1297 = vld [vmem:[%s7] sm:$0x1]
        %v1299 = vlaneseq
        %v1300 = vshrl.u32 %v1299, 7
        %v1301 = vsub.s32 0, %v1300
        %v1302 = vrot.slane %v1297, %v1301
        %v1305 = vsel %vm414, %v1292, 0
        %1307 = vmatprep.subr.mxu0 0.0
        %1308 = vmatpush1.msra.mxu0 %v1293
        %1309 = vmatprep.subr.mxu0 0.0
        %1310 = vmatpush1.msra.mxu0 %v1294
        %1311 = vmatprep.subr.mxu0 0.0
        %1312 = vmatpush1.msra.mxu0 %v1295
        %1313 = vmatprep.subr.mxu0 0.0
        %1314 = vmatpush1.msra.mxu0 %v1296
        %1315 = vmatprep.subr.mxu0 0.0
        %1316 = vmatpush1.msra.mxu0 0.0
        %1317 = vmatprep.subr.mxu0 0.0
        %1318 = vmatpush1.msra.mxu0 0.0
        %1319 = vmatprep.subr.mxu0 0.0
        %1320 = vmatpush1.msra.mxu0 0.0
        %1321 = vmatprep.subr.mxu0 0.0
        %1322 = vmatpush1.msra.mxu0 0.0
        %1323 = vmatprep.subr.mxu0 0.0
        %1324 = vmatpush1.msra.mxu0 0.0
        %1325 = vmatprep.subr.mxu0 0.0
        %1326 = vmatpush1.msra.mxu0 0.0
        %1327 = vmatprep.subr.mxu0 0.0
        %1328 = vmatpush1.msra.mxu0 0.0
        %1329 = vmatprep.subr.mxu0 0.0
        %1330 = vmatpush1.msra.mxu0 0.0
        %1331 = vmatprep.subr.mxu0 0.0
        %1332 = vmatpush1.msra.mxu0 0.0
        %1333 = vmatprep.subr.mxu0 0.0
        %1334 = vmatpush1.msra.mxu0 0.0
        %1335 = vmatprep.subr.mxu0 0.0
        %1336 = vmatpush1.msra.mxu0 0.0
        %1337 = vmatprep.subr.mxu0 0.0
        %1338 = vmatpush1.msra.mxu0 0.0
        %1339 = vmatprep.subr.mxu0 0.0
        %1340 = vmatpush1.msra.mxu0 0.0
        %1341 = vmatprep.subr.mxu0 0.0
        %1342 = vmatpush1.msra.mxu0 0.0
        %1343 = vmatprep.subr.mxu0 0.0
        %1344 = vmatpush1.msra.mxu0 0.0
        %1345 = vmatprep.subr.mxu0 0.0
        %1346 = vmatpush1.msra.mxu0 0.0
        %1347 = vmatprep.subr.mxu0 0.0
        %1348 = vmatpush1.msra.mxu0 0.0
        %1349 = vmatprep.subr.mxu0 0.0
        %1350 = vmatpush1.msra.mxu0 0.0
        %1351 = vmatprep.subr.mxu0 0.0
        %1352 = vmatpush1.msra.mxu0 0.0
        %1353 = vmatprep.subr.mxu0 0.0
        %1354 = vmatpush1.msra.mxu0 0.0
        %1355 = vmatprep.subr.mxu0 0.0
        %1356 = vmatpush1.msra.mxu0 0.0
        %1357 = vmatprep.subr.mxu0 0.0
        %1358 = vmatpush1.msra.mxu0 0.0
        %1359 = vmatprep.subr.mxu0 0.0
        %1360 = vmatpush1.msra.mxu0 0.0
        %1361 = vmatprep.subr.mxu0 0.0
        %1362 = vmatpush1.msra.mxu0 0.0
        %1363 = vmatprep.subr.mxu0 0.0
        %1364 = vmatpush1.msra.mxu0 0.0
        %1365 = vmatprep.subr.mxu0 0.0
        %1366 = vmatpush1.msra.mxu0 0.0
        %1367 = vmatprep.subr.mxu0 0.0
        %1368 = vmatpush1.msra.mxu0 0.0
        %1369 = vmatprep.subr.mxu0 0.0
        %1370 = vmatpush1.msra.mxu0 0.0
        %1371 = vmatprep.mubr.f32.mxu0 0.0
        %1372 = vmatmul.mubr.f32.gmra.mrb[0].mxu0 %v1305
        %v1373 = vpop.f32.mrb[0].mxu0
        %v1374 = vadd.f32 %v1302, %v1373
        %v1375 = vpop.f32.mrb[0].mxu0
        %1376 = vdwg.mxu0
        %v1377 = vmax.f32 %v1374, 0.0
        %v1378 = vld [vmem:[%s8] sm:$0xff]
        %v1379 = vld [vmem:[%s8 + $0x8] sm:$0xff]
        %v1380 = vld [vmem:[%s8 + $0x10] sm:$0xff]
        %v1381 = vld [vmem:[%s8 + $0x18] sm:$0xff]
        %v1382 = vld [vmem:[%s8 + $0x20] sm:$0xff]
        %v1383 = vld [vmem:[%s8 + $0x28] sm:$0xff]
        %v1384 = vld [vmem:[%s8 + $0x30] sm:$0xff]
        %v1385 = vld [vmem:[%s8 + $0x38] sm:$0xff]
        %v1386 = vld [vmem:[%s8 + $0x40] sm:$0xff]
        %v1387 = vld [vmem:[%s8 + $0x48] sm:$0xff]
        %v1388 = vld [vmem:[%s8 + $0x50] sm:$0xff]
        %v1389 = vld [vmem:[%s8 + $0x58] sm:$0xff]
        %v1390 = vld [vmem:[%s8 + $0x60] sm:$0xff]
        %v1391 = vld [vmem:[%s8 + $0x68] sm:$0xff]
        %v1392 = vld [vmem:[%s8 + $0x70] sm:$0xff]
        %v1393 = vld [vmem:[%s8 + $0x78] sm:$0xff]
        %v1394 = vld [vmem:[%s9] sm:$0x1]
        %v1396 = vlaneseq
        %v1397 = vshrl.u32 %v1396, 7
        %v1398 = vsub.s32 0, %v1397
        %v1399 = vrot.slane %v1394, %v1398
        %1401 = vmatprep.subr.mxu0 0.0
        %1402 = vmatpush1.msra.mxu0 %v1378
        %1403 = vmatprep.subr.mxu0 0.0
        %1404 = vmatpush1.msra.mxu0 %v1379
        %1405 = vmatprep.subr.mxu0 0.0
        %1406 = vmatpush1.msra.mxu0 %v1380
        %1407 = vmatprep.subr.mxu0 0.0
        %1408 = vmatpush1.msra.mxu0 %v1381
        %1409 = vmatprep.subr.mxu0 0.0
        %1410 = vmatpush1.msra.mxu0 %v1382
        %1411 = vmatprep.subr.mxu0 0.0
        %1412 = vmatpush1.msra.mxu0 %v1383
        %1413 = vmatprep.subr.mxu0 0.0
        %1414 = vmatpush1.msra.mxu0 %v1384
        %1415 = vmatprep.subr.mxu0 0.0
        %1416 = vmatpush1.msra.mxu0 %v1385
        %1417 = vmatprep.subr.mxu0 0.0
        %1418 = vmatpush1.msra.mxu0 %v1386
        %1419 = vmatprep.subr.mxu0 0.0
        %1420 = vmatpush1.msra.mxu0 %v1387
        %1421 = vmatprep.subr.mxu0 0.0
        %1422 = vmatpush1.msra.mxu0 %v1388
        %1423 = vmatprep.subr.mxu0 0.0
        %1424 = vmatpush1.msra.mxu0 %v1389
        %1425 = vmatprep.subr.mxu0 0.0
        %1426 = vmatpush1.msra.mxu0 %v1390
        %1427 = vmatprep.subr.mxu0 0.0
        %1428 = vmatpush1.msra.mxu0 %v1391
        %1429 = vmatprep.subr.mxu0 0.0
        %1430 = vmatpush1.msra.mxu0 %v1392
        %1431 = vmatprep.subr.mxu0 0.0
        %1432 = vmatpush1.msra.mxu0 %v1393
        %1433 = vmatprep.subr.mxu0 0.0
        %1434 = vmatpush1.msra.mxu0 0.0
        %1435 = vmatprep.subr.mxu0 0.0
        %1436 = vmatpush1.msra.mxu0 0.0
        %1437 = vmatprep.subr.mxu0 0.0
        %1438 = vmatpush1.msra.mxu0 0.0
        %1439 = vmatprep.subr.mxu0 0.0
        %1440 = vmatpush1.msra.mxu0 0.0
        %1441 = vmatprep.subr.mxu0 0.0
        %1442 = vmatpush1.msra.mxu0 0.0
        %1443 = vmatprep.subr.mxu0 0.0
        %1444 = vmatpush1.msra.mxu0 0.0
        %1445 = vmatprep.subr.mxu0 0.0
        %1446 = vmatpush1.msra.mxu0 0.0
        %1447 = vmatprep.subr.mxu0 0.0
        %1448 = vmatpush1.msra.mxu0 0.0
        %1449 = vmatprep.subr.mxu0 0.0
        %1450 = vmatpush1.msra.mxu0 0.0
        %1451 = vmatprep.subr.mxu0 0.0
        %1452 = vmatpush1.msra.mxu0 0.0
        %1453 = vmatprep.subr.mxu0 0.0
        %1454 = vmatpush1.msra.mxu0 0.0
        %1455 = vmatprep.subr.mxu0 0.0
        %1456 = vmatpush1.msra.mxu0 0.0
        %1457 = vmatprep.subr.mxu0 0.0
        %1458 = vmatpush1.msra.mxu0 0.0
        %1459 = vmatprep.subr.mxu0 0.0
        %1460 = vmatpush1.msra.mxu0 0.0
        %1461 = vmatprep.subr.mxu0 0.0
        %1462 = vmatpush1.msra.mxu0 0.0
        %1463 = vmatprep.subr.mxu0 0.0
        %1464 = vmatpush1.msra.mxu0 0.0
        %1465 = vmatprep.mubr.f32.mxu0 0.0
        %1466 = vmatmul.mubr.f32.gmra.mrb[0].mxu0 %v1377
        %v1467 = vpop.f32.mrb[0].mxu0
        %v1468 = vadd.f32 %v1399, %v1467
        %v1469 = vpop.f32.mrb[0].mxu0
        %1470 = vdwg.mxu0
        %v1471 = vadd.f32 %v1292, %v1468
        %v1472 = vld [vmem:[%s10] sm:$0x1]
        %v1473 = vld [vmem:[%s11] sm:$0x1]
        %v1474 = vsel %vm414, %v1471, 0.0
        %1475 = vadd.xlane.f32.xlu0 %v1474
        %v1476 = vpop.xlane.xlu0 %1475
        %v1477 = vmul.f32 %v1476, %v1268
        %v1478 = vsub.f32 %v1471, %v1477
        %v1479 = vmul.f32 %v1478, %v1478
        %v1480 = vsel %vm414, %v1479, 0.0
        %1481 = vadd.xlane.f32.xlu0 %v1480
        %v1482 = vpop.xlane.xlu0 %1481
        %v1483 = vmul.f32 %v1482, %v1268
        %v1484 = vadd.f32 %v1483, 1e-05
        %v1485 = vrsqrt.pop %v1484
        %v1486 = vmul.f32 %v1478, %v1485
        %v1488 = vlaneseq
        %v1489 = vshrl.u32 %v1488, 7
        %v1490 = vsub.s32 0, %v1489
        %v1491 = vrot.slane %v1472, %v1490
        %v1493 = vmul.f32 %v1486, %v1491
        %v1495 = vlaneseq
        %v1496 = vshrl.u32 %v1495, 7
        %v1497 = vsub.s32 0, %v1496
        %v1498 = vrot.slane %v1473, %v1497
        %v1500 = vadd.f32 %v1493, %v1498
        %1501 = vst.msk [vmem:[%s404] sm:$0xff] %vm414, %v1500
        %s1502 = sand.u32 %s291, 1
        %s1503 = scalar_lea.sflag [#allocation3], %s1502
        %s1504 = sand.u32 %s291, 1
        %s1505 = smul.addr %s1504, 8
        %s1506 = scalar_lea.vmem [#allocation2], %s1505
        // Predicated region
        $region69: #{tpu_custom_call.1} parent=67 // pred_check
          %p1507 = pneg %p301
        $region70: #{tpu_custom_call.1} parent=67 // pred_check_branch
          %1509 = sbr.rel (%p1507) target = $region72
        $region71: #{tpu_custom_call.1} parent=67 // pred_region
          %s1511 = ssub.s32 128, 128
          %1512 = vsyncadd %s1503, %s1511
          %s1513 = smul.addr %s26, 128
          %s1514 = scalar_lea.hbm %s12, %s1513
          %s1516 = sshll.u32 %s1506, 4
          %s1517 = int_to_ptr.vmem [resolvable:$true] %s1516
          %1519 = dma.vmem_to_hbm [thread:$0]  %s1517, 128, %s1514, %s1503
        $region72: #{tpu_custom_call.1} parent=67 // pred_fallthru
          _
      $region68: #{tpu_custom_call.1} parent=5 // pred_fallthru
        _
      %p1520 = scmp.le.s32.totalorder 2, %s21
      // Predicated region
      $region73: #{tpu_custom_call.1} parent=5 // pred_check
        %p1521 = pneg %p1520
      $region74: #{tpu_custom_call.1} parent=5 // pred_check_branch
        %1523 = sbr.rel (%p1521) target = $region76
      $region75: #{tpu_custom_call.1} parent=5 // pred_region
        %s1524 = ssub.s32 %s21, 2
        // Predicated region
        $region77: #{tpu_custom_call.1} parent=75 // pred_check
          %p1525 = pneg %p307
        $region78: #{tpu_custom_call.1} parent=75 // pred_check_branch
          %1527 = sbr.rel (%p1525) target = $region80
        $region79: #{tpu_custom_call.1} parent=75 // pred_region
          %s1528 = sand.u32 %s292, 1
          %s1529 = scalar_lea.sflag [#allocation3], %s1528
          %s1530 = sand.u32 %s292, 1
          %s1531 = smul.addr %s1530, 8
          %s1532 = scalar_lea.vmem [#allocation2], %s1531
          %1533 = dma.done %s1529, 128
        $region80: #{tpu_custom_call.1} parent=75 // pred_fallthru
          _
      $region76: #{tpu_custom_call.1} parent=5 // pred_fallthru
        _
    $region6: #{tpu_custom_call.1} parent=1 // loop_footer
      %s25 = sadd.s32 1, %s21
    $region7: #{tpu_custom_call.1} parent=1 // loop_footer_branch
      %20 = sbr.rel target = $region3
    $region8: #{tpu_custom_call.1} parent=1 // loop_exit
      _
    %1534 = vsyncpa [#allocation3], 1
    %s1535 = scalar_lea.sflag [#allocation3], 1
    %1536 = vsyncpa %s1535, 1

</llo_original>
